<compile_context>
chip_gen: v6e
topology: v6e:2x2x1
jax: 0.10.0
libtpu: 0.0.40
codegen_flags: <defaults>
</compile_context>

<pallas_src>
import numpy as np
import jax
import jax.numpy as jnp
from jax import lax
from jax.experimental import pallas as pl
from jax.experimental.pallas import tpu as pltpu


def _vmem():
    return pl.BlockSpec(memory_space=pltpu.MemorySpace.VMEM)


# ----------------------------- fused Pallas kernel ------------------------------

def build_fused_forward(rel_meta, num_nodes, hidden, iterations):
    """rel_meta: static tuple of (arity, num_tuples, padded_num_tuples) per active relation.

    Kernel argument layout (all VMEM refs):
      per relation r (arity A, T tuples, T_pad = round_up(T, 8)):
          idx_r   (A*T_pad, 1) i32   -- stacked node indices (row a*T_pad+t = index of pos a
                                         of tuple t; padding rows are -1)
          b1_r    (1, A*H)     f32
          for a in range(A):
              w1_{r,a} (H, A*H)   bf16   -- rows a*H:(a+1)*H of W1
              w2_{r,a} (A*H, H)   bf16   -- cols a*H:(a+1)*H of W2
              b2_{r,a} (1, H)     f32
      then update-MLP params: w1a (H,2H) bf16, w1b (H,2H) bf16, b1u (1,2H) f32,
                              w2u (2H,H) bf16, b2u (1,H) f32
      then initial node_states (N, H) f32
      output: next node_states (N, H) f32
    """
    N, H = num_nodes, hidden

    def kernel(*refs):
        # ---- collect Ref handles only (values are read at point of use) ----
        pos = 0
        rel_refs = []
        for (arity, _T, _Tp) in rel_meta:
            idx_ref = refs[pos]
            b1_ref = refs[pos + 1]
            pos += 2
            per_a = []
            for _ in range(arity):
                per_a.append((refs[pos], refs[pos + 1], refs[pos + 2]))  # (w1_a, w2_a, b2_a)
                pos += 3
            rel_refs.append((idx_ref, b1_ref, per_a))

        w1a_ref, w1b_ref, b1u_ref, w2u_ref, b2u_ref = refs[pos:pos + 5]
        ninit_ref = refs[pos + 5]
        out_ref = refs[pos + 6]

        def one_iteration(ns):
            ns_bf = ns.astype(jnp.bfloat16)

            # online smooth-max accumulators
            m_run = jnp.full((1, 1), -1e30, jnp.float32)      # running global max offset
            s_run = jnp.zeros((N, H), jnp.float32)            # running sum of exp(8*(y - m_run))

            for (arity, T, T_pad), (idx_ref, b1_ref, per_a) in zip(rel_meta, rel_refs):
                AT = arity * T_pad
                idx = idx_ref[...]                                              # (AT, 1) i32
                # gather one-hot, rebuilt per iteration (cheap vcmp); padding rows (-1) are 0.
                onehot = (lax.broadcasted_iota(jnp.int32, (AT, N), 1)
                          == idx).astype(jnp.bfloat16)                          # (AT, N)

                # batched gather: one tall matmul per relation
                gathered = jnp.dot(onehot, ns_bf,
                                   preferred_element_type=jnp.float32)          # (AT, H)

                # first linear on the "concatenated" gathered input without an explicit concat:
                #   x @ W1 = sum_a gathered_a @ W1[a*H:(a+1)*H, :]
                pre = None
                for a in range(arity):
                    w1_a = per_a[a][0][...]                                     # (H, D) bf16
                    g_a = gathered[a * T_pad:(a + 1) * T_pad, :].astype(jnp.bfloat16)
                    term = jnp.dot(g_a, w1_a, preferred_element_type=jnp.float32)
                    pre = term if pre is None else pre + term                   # (T_pad, D)
                h = jnp.maximum(pre + b1_ref[...], 0.0)                         # (T_pad, D) f32
                h_bf = h.astype(jnp.bfloat16)

                if T_pad != T:
                    valid = lax.broadcasted_iota(jnp.int32, (T_pad, 1), 0) < T  # (T_pad, 1)

                # second linear, split by output column blocks -> stacked (AT, H) y
                y_blocks = []
                for a in range(arity):
                    w2_a = per_a[a][1][...]                                     # (D, H) bf16
                    b2_a = per_a[a][2][...]                                     # (1, H) f32
                    y_a = jnp.dot(h_bf, w2_a, preferred_element_type=jnp.float32) + b2_a
                    if T_pad != T:
                        # mask padding rows so they can neither poison the max nor overflow exp
                        y_a = jnp.where(valid, y_a, -1e30)
                    y_blocks.append(y_a)
                y_all = y_blocks[0] if arity == 1 else jnp.concatenate(y_blocks, axis=0)

                # online max + rescale (exactly matches the reference global-max offset)
                m_rel = jnp.max(jnp.max(y_all, axis=1, keepdims=True),
                                axis=0, keepdims=True)                          # (1, 1)
                m_new = jnp.maximum(m_run, m_rel)
                rescale = jnp.exp(8.0 * (m_run - m_new))                        # (1, 1)
                exps = jnp.exp(8.0 * (y_all - m_new)).astype(jnp.bfloat16)      # (AT, H)

                # scatter_add as onehot^T @ exps: contract over the stacked tuple axis.
                scatter = lax.dot_general(onehot, exps,
                                          dimension_numbers=(((0,), (0,)), ((), ())),
                                          preferred_element_type=jnp.float32)   # (N, H)
                s_run = s_run * rescale + scatter
                m_run = m_new

            # epsilon added at the end: log(1e-16 + sum exp(8*(y - max))) == reference
            max_msg = 0.125 * jnp.log(s_run + 1e-16) + m_run                    # (N, H)

            # update MLP on cat([max_msg, ns]) via split-W matmuls
            hid = (jnp.dot(max_msg.astype(jnp.bfloat16), w1a_ref[...],
                           preferred_element_type=jnp.float32)
                   + jnp.dot(ns_bf, w1b_ref[...], preferred_element_type=jnp.float32)
                   + b1u_ref[...])
            hid = jnp.maximum(hid, 0.0)
            return (jnp.dot(hid.astype(jnp.bfloat16), w2u_ref[...],
                            preferred_element_type=jnp.float32) + b2u_ref[...])  # (N, H)

        # unroll only small iteration counts: the body is MXU-bound, full unrolling at real
        # iteration counts just bloats instruction count / vreg live ranges.
        unroll = iterations <= 4
        ns_final = lax.fori_loop(0, iterations, lambda _, s: one_iteration(s),
                                 ninit_ref[...], unroll=unroll)
        out_ref[...] = ns_final

    return kernel


# ---------------------------- parameter setup ------------------------------

def _linear_params(key, fan_in, fan_out):
    # Mimic torch.nn.Linear default init: U(-1/sqrt(fan_in), 1/sqrt(fan_in)); store W as (in, out).
    kw, kb = jax.random.split(key)
    bound = float(fan_in) ** -0.5
    w = jax.random.uniform(kw, (fan_in, fan_out), jnp.float32, -bound, bound)
    b = jax.random.uniform(kb, (1, fan_out), jnp.float32, -bound, bound)
    return w, b


def init_model(key, relations, hidden):
    params = {"rel": {}, "update": None}
    for rel_id, arity in relations:
        key, k1, k2 = jax.random.split(key, 3)
        d = arity * hidden
        if d > 0:
            w1, b1 = _linear_params(k1, d, d)
            w2, b2 = _linear_params(k2, d, d)
            params["rel"][rel_id] = (w1, b1, w2, b2)
        else:
            params["rel"][rel_id] = None
    key, k1, k2 = jax.random.split(key, 3)
    wu1, bu1 = _linear_params(k1, 2 * hidden, 2 * hidden)
    wu2, bu2 = _linear_params(k2, 2 * hidden, hidden)
    params["update"] = (wu1[:hidden], wu1[hidden:], bu1, wu2, bu2)
    return params


# ------------------------------ forward pass -------------------------------

def initialize_nodes(key, num_objects, hidden):
    zeros = jnp.zeros((num_objects, hidden // 2 + hidden % 2), jnp.float32)
    rand = jax.random.normal(key, (num_objects, hidden // 2), dtype=jnp.float32)
    return jnp.concatenate([zeros, rand], axis=1)


def model_forward(node_key, relation_indices, object_counts, relations, iterations, hidden, params):
    N = sum(object_counts)
    H = hidden
    node_states = initialize_nodes(node_key, N, H)
    bf16 = jnp.bfloat16

    # static per-relation metadata + host-side weight splitting / index stacking
    rel_meta = []
    rel_args = []
    for rel_id, arity in relations:
        p = params["rel"].get(rel_id)
        if p is None or rel_id not in relation_indices:
            continue
        idx_np = np.asarray(relation_indices[rel_id], dtype=np.int32)
        if idx_np.size == 0:
            # a relation with zero ground atoms contributes nothing (and would make
            # torch.max error in the reference) -> skip statically
            continue
        T = idx_np.size // arity
        T_pad = ((T + 7) // 8) * 8                      # sublane-align tuple blocks
        icol = idx_np.reshape(T, arity)                 # icol[t, a] = node index of pos a of tuple t
        stacked = np.full((arity * T_pad, 1), -1, np.int32)
        for a in range(arity):
            stacked[a * T_pad:a * T_pad + T, 0] = icol[:, a]

        w1, b1, w2, b2 = p
        rel_meta.append((arity, T, T_pad))
        rel_args.append(jnp.asarray(stacked))                           # (A*T_pad, 1) i32
        rel_args.append(b1)                                             # (1, A*H)   f32
        for a in range(arity):
            rel_args.append(w1[a * H:(a + 1) * H, :].astype(bf16))      # (H, A*H)   bf16
            rel_args.append(w2[:, a * H:(a + 1) * H].astype(bf16))      # (A*H, H)   bf16
            rel_args.append(b2[:, a * H:(a + 1) * H])                   # (1, H)     f32

    assert rel_meta, "at least one relation must have ground atoms"

    w1a, w1b, b1u, w2u, b2u = params["update"]
    args = rel_args + [w1a.astype(bf16), w1b.astype(bf16), b1u,
                       w2u.astype(bf16), b2u, node_states]

    # -------- explicit scoped-VMEM budget (defaults are 16/32 MiB, far below physical) --------
    est = sum(int(a.size) * a.dtype.itemsize for a in args) + N * H * 4        # inputs + output
    for (arity, T, T_pad) in rel_meta:
        AT = arity * T_pad
        est += AT * N * 2                      # one-hot (bf16), rebuilt per relation
        est += AT * H * 4 * 4                  # gathered / y / exps intermediates
        est += T_pad * arity * H * 4 * 2       # pre / h
    est += N * H * 4 * 8                       # ns carry, exps accumulator, max_msg, hid, ...
    vmem_limit = int(min(max(2 * est, 32 * 1024 * 1024), 64 * 1024 * 1024))    # 64 MiB = v7x physical

    kernel = build_fused_forward(tuple(rel_meta), N, H, iterations)
    return pl.pallas_call(
        kernel,
        out_shape=jax.ShapeDtypeStruct((N, H), jnp.float32),
        in_specs=[_vmem()] * len(args),
        out_specs=_vmem(),
        compiler_params=pltpu.CompilerParams(vmem_limit_bytes=vmem_limit),
    )(*args)
    # TODO(synk): for large problem sizes (N, T >> 1k), split node-rows / tuple blocks over a grid
    # (dimension_semantics=("parallel", "arbitrary")) with the iteration loop hoisted outside the
    # kernel so v7x's second TensorCore is used and per-tile one-hots stay inside 64 MiB VMEM.
    # TODO(synk): H=32 leaves MXU output columns / the (N,32) store path mostly idle; padding H to
    # 128 (zero-padded weights) is a structural model change left to the caller.


# --------------------------------- main ------------------------------------

if __name__ == "__main__":
    hidden = 32
    iterations = 2
    relations = [(0, 1), (1, 2)]          # (relation_id, arity) — non-PDDL (integer keyed) variant
    object_counts = [5, 3]                # 8 objects total

    key = jax.random.PRNGKey(0)
    kp, kn, kr1, kr2 = jax.random.split(key, 4)
    params = init_model(kp, relations, hidden)

    # relation 0 (arity 1): 4 ground atoms -> 4 node indices
    # relation 1 (arity 2): 3 ground atoms -> 6 node indices
    relation_indices = {
        0: jax.random.randint(kr1, (4,), 0, sum(object_counts), dtype=jnp.int32),
        1: jax.random.randint(kr2, (6,), 0, sum(object_counts), dtype=jnp.int32),
    }

    out = model_forward(kn, relation_indices, object_counts, relations,
                        iterations, hidden, params)
    out = jax.block_until_ready(out)

    assert out.shape == (sum(object_counts), hidden)
    assert bool(jnp.all(jnp.isfinite(out)))
    print("KERNEL_OK")
</pallas_src>

<mosaic_0001>
module attributes {stable_mosaic.version = 11 : i64} {
  func.func @kernel(%arg0: memref<8x1xi32, #tpu.memory_space<vmem>>, %arg1: memref<1x32xf32, #tpu.memory_space<vmem>>, %arg2: memref<32x32xbf16, #tpu.memory_space<vmem>>, %arg3: memref<32x32xbf16, #tpu.memory_space<vmem>>, %arg4: memref<1x32xf32, #tpu.memory_space<vmem>>, %arg5: memref<16x1xi32, #tpu.memory_space<vmem>>, %arg6: memref<1x64xf32, #tpu.memory_space<vmem>>, %arg7: memref<32x64xbf16, #tpu.memory_space<vmem>>, %arg8: memref<64x32xbf16, #tpu.memory_space<vmem>>, %arg9: memref<1x32xf32, #tpu.memory_space<vmem>>, %arg10: memref<32x64xbf16, #tpu.memory_space<vmem>>, %arg11: memref<64x32xbf16, #tpu.memory_space<vmem>>, %arg12: memref<1x32xf32, #tpu.memory_space<vmem>>, %arg13: memref<32x64xbf16, #tpu.memory_space<vmem>>, %arg14: memref<32x64xbf16, #tpu.memory_space<vmem>>, %arg15: memref<1x64xf32, #tpu.memory_space<vmem>>, %arg16: memref<64x32xbf16, #tpu.memory_space<vmem>>, %arg17: memref<1x32xf32, #tpu.memory_space<vmem>>, %arg18: memref<8x32xf32, #tpu.memory_space<vmem>>, %arg19: memref<8x32xf32, #tpu.memory_space<vmem>>) attributes {dimension_semantics = [], scalar_prefetch = 0 : i64, scratch_operands = 0 : i64, tpu.core_type = #tpu.core_type<tc>} {
    %c0 = arith.constant 0 : index
    %c0_0 = arith.constant 0 : index
    %0 = vector.load %arg18[%c0, %c0_0] : memref<8x32xf32, #tpu.memory_space<vmem>>, vector<8x32xf32>
    %c0_i32 = arith.constant 0 : i32
    %1 = arith.truncf %0 : vector<8x32xf32> to vector<8x32xbf16>
    %cst = arith.constant -1.000000e+30 : f32
    %2 = vector.broadcast %cst : f32 to vector<1x1xf32>
    %cst_1 = arith.constant 0.000000e+00 : f32
    %3 = vector.broadcast %cst_1 : f32 to vector<8x32xf32>
    %c0_2 = arith.constant 0 : index
    %c0_3 = arith.constant 0 : index
    %4 = vector.load %arg0[%c0_2, %c0_3] : memref<8x1xi32, #tpu.memory_space<vmem>>, vector<8x1xi32>
    %5 = tpu.iota {dimensions = array<i32: 1>} : vector<8x8xi32>
    %6 = vector.broadcast %4 : vector<8x1xi32> to vector<8x8xi32>
    %7 = arith.cmpi eq, %5, %6 : vector<8x8xi32>
    %8 = arith.extui %7 : vector<8x8xi1> to vector<8x8xi32>
    %9 = arith.sitofp %8 : vector<8x8xi32> to vector<8x8xf32>
    %10 = arith.truncf %9 : vector<8x8xf32> to vector<8x8xbf16>
    %cst_4 = arith.constant dense<0.000000e+00> : vector<8x32xf32>
    %11 = tpu.matmul %10, %1, %cst_4 {dimension_numbers = #tpu.dot_dimension_numbers<[1], [0], [0], [1], [0, 0, 1, 1], [], []>} : vector<8x8xbf16>, vector<8x32xbf16>, vector<8x32xf32> -> vector<8x32xf32>
    %c0_5 = arith.constant 0 : index
    %c0_6 = arith.constant 0 : index
    %12 = vector.load %arg2[%c0_5, %c0_6] : memref<32x32xbf16, #tpu.memory_space<vmem>>, vector<32x32xbf16>
    %13 = arith.truncf %11 : vector<8x32xf32> to vector<8x32xbf16>
    %cst_7 = arith.constant dense<0.000000e+00> : vector<8x32xf32>
    %14 = tpu.matmul %13, %12, %cst_7 {dimension_numbers = #tpu.dot_dimension_numbers<[1], [0], [0], [1], [0, 0, 1, 1], [], []>} : vector<8x32xbf16>, vector<32x32xbf16>, vector<8x32xf32> -> vector<8x32xf32>
    %c0_8 = arith.constant 0 : index
    %c0_9 = arith.constant 0 : index
    %15 = vector.load %arg1[%c0_8, %c0_9] : memref<1x32xf32, #tpu.memory_space<vmem>>, vector<1x32xf32>
    %16 = vector.broadcast %15 : vector<1x32xf32> to vector<8x32xf32>
    %17 = arith.addf %14, %16 : vector<8x32xf32>
    %cst_10 = arith.constant 0.000000e+00 : f32
    %18 = vector.broadcast %cst_10 : f32 to vector<8x32xf32>
    %19 = arith.maximumf %17, %18 : vector<8x32xf32>
    %20 = arith.truncf %19 : vector<8x32xf32> to vector<8x32xbf16>
    %21 = tpu.iota {dimensions = array<i32: 0>} : vector<8x1xi32>
    %c4_i32 = arith.constant 4 : i32
    %22 = vector.broadcast %c4_i32 : i32 to vector<8x1xi32>
    %23 = arith.cmpi slt, %21, %22 : vector<8x1xi32>
    %c0_11 = arith.constant 0 : index
    %c0_12 = arith.constant 0 : index
    %24 = vector.load %arg3[%c0_11, %c0_12] : memref<32x32xbf16, #tpu.memory_space<vmem>>, vector<32x32xbf16>
    %c0_13 = arith.constant 0 : index
    %c0_14 = arith.constant 0 : index
    %25 = vector.load %arg4[%c0_13, %c0_14] : memref<1x32xf32, #tpu.memory_space<vmem>>, vector<1x32xf32>
    %cst_15 = arith.constant dense<0.000000e+00> : vector<8x32xf32>
    %26 = tpu.matmul %20, %24, %cst_15 {dimension_numbers = #tpu.dot_dimension_numbers<[1], [0], [0], [1], [0, 0, 1, 1], [], []>} : vector<8x32xbf16>, vector<32x32xbf16>, vector<8x32xf32> -> vector<8x32xf32>
    %27 = vector.broadcast %25 : vector<1x32xf32> to vector<8x32xf32>
    %28 = arith.addf %26, %27 : vector<8x32xf32>
    %cst_16 = arith.constant -1.000000e+30 : f32
    %29 = vector.shape_cast %23 : vector<8x1xi1> to vector<8x1xi1>
    %30 = vector.broadcast %29 : vector<8x1xi1> to vector<8x32xi1>
    %31 = vector.broadcast %cst_16 : f32 to vector<8x32xf32>
    %32 = arith.select %30, %28, %31 : vector<8x32xi1>, vector<8x32xf32>
    %cst_17 = arith.constant dense<0xFF800000> : vector<8xf32>
    %33 = vector.multi_reduction <maximumf>, %32, %cst_17 [1] : vector<8x32xf32> to vector<8xf32>
    %34 = vector.shape_cast %33 : vector<8xf32> to vector<8x1xf32>
    %cst_18 = arith.constant dense<0xFF800000> : vector<1xf32>
    %35 = vector.multi_reduction <maximumf>, %34, %cst_18 [0] : vector<8x1xf32> to vector<1xf32>
    %36 = vector.shape_cast %35 : vector<1xf32> to vector<1x1xf32>
    %37 = arith.maximumf %2, %36 : vector<1x1xf32>
    %38 = arith.subf %2, %37 : vector<1x1xf32>
    %cst_19 = arith.constant 8.000000e+00 : f32
    %39 = vector.broadcast %cst_19 : f32 to vector<1x1xf32>
    %40 = arith.mulf %39, %38 : vector<1x1xf32>
    %41 = math.exp %40 : vector<1x1xf32>
    %42 = vector.broadcast %37 : vector<1x1xf32> to vector<8x32xf32>
    %43 = arith.subf %32, %42 : vector<8x32xf32>
    %cst_20 = arith.constant 8.000000e+00 : f32
    %44 = vector.broadcast %cst_20 : f32 to vector<8x32xf32>
    %45 = arith.mulf %44, %43 : vector<8x32xf32>
    %46 = math.exp %45 : vector<8x32xf32>
    %47 = arith.truncf %46 : vector<8x32xf32> to vector<8x32xbf16>
    %cst_21 = arith.constant dense<0.000000e+00> : vector<8x32xf32>
    %48 = tpu.matmul %10, %47, %cst_21 {dimension_numbers = #tpu.dot_dimension_numbers<[0], [0], [1], [1], [0, 1, 1, 1], [], []>} : vector<8x8xbf16>, vector<8x32xbf16>, vector<8x32xf32> -> vector<8x32xf32>
    %49 = vector.broadcast %41 : vector<1x1xf32> to vector<8x32xf32>
    %50 = arith.mulf %3, %49 : vector<8x32xf32>
    %51 = arith.addf %50, %48 : vector<8x32xf32>
    %c0_22 = arith.constant 0 : index
    %c0_23 = arith.constant 0 : index
    %52 = vector.load %arg5[%c0_22, %c0_23] : memref<16x1xi32, #tpu.memory_space<vmem>>, vector<16x1xi32>
    %53 = tpu.iota {dimensions = array<i32: 1>} : vector<16x8xi32>
    %54 = vector.broadcast %52 : vector<16x1xi32> to vector<16x8xi32>
    %55 = arith.cmpi eq, %53, %54 : vector<16x8xi32>
    %56 = arith.extui %55 : vector<16x8xi1> to vector<16x8xi32>
    %57 = arith.sitofp %56 : vector<16x8xi32> to vector<16x8xf32>
    %58 = arith.truncf %57 : vector<16x8xf32> to vector<16x8xbf16>
    %cst_24 = arith.constant dense<0.000000e+00> : vector<16x32xf32>
    %59 = tpu.matmul %58, %1, %cst_24 {dimension_numbers = #tpu.dot_dimension_numbers<[1], [0], [0], [1], [0, 0, 1, 1], [], []>} : vector<16x8xbf16>, vector<8x32xbf16>, vector<16x32xf32> -> vector<16x32xf32>
    %c0_25 = arith.constant 0 : index
    %c0_26 = arith.constant 0 : index
    %60 = vector.load %arg7[%c0_25, %c0_26] : memref<32x64xbf16, #tpu.memory_space<vmem>>, vector<32x64xbf16>
    %61 = vector.extract_strided_slice %59 {offsets = [0, 0], sizes = [8, 32], strides = [1, 1]} : vector<16x32xf32> to vector<8x32xf32>
    %62 = arith.truncf %61 : vector<8x32xf32> to vector<8x32xbf16>
    %cst_27 = arith.constant dense<0.000000e+00> : vector<8x64xf32>
    %63 = tpu.matmul %62, %60, %cst_27 {dimension_numbers = #tpu.dot_dimension_numbers<[1], [0], [0], [1], [0, 0, 1, 1], [], []>} : vector<8x32xbf16>, vector<32x64xbf16>, vector<8x64xf32> -> vector<8x64xf32>
    %c0_28 = arith.constant 0 : index
    %c0_29 = arith.constant 0 : index
    %64 = vector.load %arg10[%c0_28, %c0_29] : memref<32x64xbf16, #tpu.memory_space<vmem>>, vector<32x64xbf16>
    %65 = vector.extract_strided_slice %59 {offsets = [8, 0], sizes = [8, 32], strides = [1, 1]} : vector<16x32xf32> to vector<8x32xf32>
    %66 = arith.truncf %65 : vector<8x32xf32> to vector<8x32xbf16>
    %cst_30 = arith.constant dense<0.000000e+00> : vector<8x64xf32>
    %67 = tpu.matmul %66, %64, %cst_30 {dimension_numbers = #tpu.dot_dimension_numbers<[1], [0], [0], [1], [0, 0, 1, 1], [], []>} : vector<8x32xbf16>, vector<32x64xbf16>, vector<8x64xf32> -> vector<8x64xf32>
    %68 = arith.addf %63, %67 : vector<8x64xf32>
    %c0_31 = arith.constant 0 : index
    %c0_32 = arith.constant 0 : index
    %69 = vector.load %arg6[%c0_31, %c0_32] : memref<1x64xf32, #tpu.memory_space<vmem>>, vector<1x64xf32>
    %70 = vector.broadcast %69 : vector<1x64xf32> to vector<8x64xf32>
    %71 = arith.addf %68, %70 : vector<8x64xf32>
    %cst_33 = arith.constant 0.000000e+00 : f32
    %72 = vector.broadcast %cst_33 : f32 to vector<8x64xf32>
    %73 = arith.maximumf %71, %72 : vector<8x64xf32>
    %74 = arith.truncf %73 : vector<8x64xf32> to vector<8x64xbf16>
    %75 = tpu.iota {dimensions = array<i32: 0>} : vector<8x1xi32>
    %c3_i32 = arith.constant 3 : i32
    %76 = vector.broadcast %c3_i32 : i32 to vector<8x1xi32>
    %77 = arith.cmpi slt, %75, %76 : vector<8x1xi32>
    %c0_34 = arith.constant 0 : index
    %c0_35 = arith.constant 0 : index
    %78 = vector.load %arg8[%c0_34, %c0_35] : memref<64x32xbf16, #tpu.memory_space<vmem>>, vector<64x32xbf16>
    %c0_36 = arith.constant 0 : index
    %c0_37 = arith.constant 0 : index
    %79 = vector.load %arg9[%c0_36, %c0_37] : memref<1x32xf32, #tpu.memory_space<vmem>>, vector<1x32xf32>
    %cst_38 = arith.constant dense<0.000000e+00> : vector<8x32xf32>
    %80 = tpu.matmul %74, %78, %cst_38 {dimension_numbers = #tpu.dot_dimension_numbers<[1], [0], [0], [1], [0, 0, 1, 1], [], []>} : vector<8x64xbf16>, vector<64x32xbf16>, vector<8x32xf32> -> vector<8x32xf32>
    %81 = vector.broadcast %79 : vector<1x32xf32> to vector<8x32xf32>
    %82 = arith.addf %80, %81 : vector<8x32xf32>
    %cst_39 = arith.constant -1.000000e+30 : f32
    %83 = vector.shape_cast %77 : vector<8x1xi1> to vector<8x1xi1>
    %84 = vector.broadcast %83 : vector<8x1xi1> to vector<8x32xi1>
    %85 = vector.broadcast %cst_39 : f32 to vector<8x32xf32>
    %86 = arith.select %84, %82, %85 : vector<8x32xi1>, vector<8x32xf32>
    %c0_40 = arith.constant 0 : index
    %c0_41 = arith.constant 0 : index
    %87 = vector.load %arg11[%c0_40, %c0_41] : memref<64x32xbf16, #tpu.memory_space<vmem>>, vector<64x32xbf16>
    %c0_42 = arith.constant 0 : index
    %c0_43 = arith.constant 0 : index
    %88 = vector.load %arg12[%c0_42, %c0_43] : memref<1x32xf32, #tpu.memory_space<vmem>>, vector<1x32xf32>
    %cst_44 = arith.constant dense<0.000000e+00> : vector<8x32xf32>
    %89 = tpu.matmul %74, %87, %cst_44 {dimension_numbers = #tpu.dot_dimension_numbers<[1], [0], [0], [1], [0, 0, 1, 1], [], []>} : vector<8x64xbf16>, vector<64x32xbf16>, vector<8x32xf32> -> vector<8x32xf32>
    %90 = vector.broadcast %88 : vector<1x32xf32> to vector<8x32xf32>
    %91 = arith.addf %89, %90 : vector<8x32xf32>
    %cst_45 = arith.constant -1.000000e+30 : f32
    %92 = vector.shape_cast %77 : vector<8x1xi1> to vector<8x1xi1>
    %93 = vector.broadcast %92 : vector<8x1xi1> to vector<8x32xi1>
    %94 = vector.broadcast %cst_45 : f32 to vector<8x32xf32>
    %95 = arith.select %93, %91, %94 : vector<8x32xi1>, vector<8x32xf32>
    %96 = tpu.concatenate %86, %95 in 0 : vector<8x32xf32>, vector<8x32xf32> -> vector<16x32xf32>
    %cst_46 = arith.constant dense<0xFF800000> : vector<16xf32>
    %97 = vector.multi_reduction <maximumf>, %96, %cst_46 [1] : vector<16x32xf32> to vector<16xf32>
    %98 = vector.shape_cast %97 : vector<16xf32> to vector<16x1xf32>
    %cst_47 = arith.constant dense<0xFF800000> : vector<1xf32>
    %99 = vector.multi_reduction <maximumf>, %98, %cst_47 [0] : vector<16x1xf32> to vector<1xf32>
    %100 = vector.shape_cast %99 : vector<1xf32> to vector<1x1xf32>
    %101 = arith.maximumf %37, %100 : vector<1x1xf32>
    %102 = arith.subf %37, %101 : vector<1x1xf32>
    %cst_48 = arith.constant 8.000000e+00 : f32
    %103 = vector.broadcast %cst_48 : f32 to vector<1x1xf32>
    %104 = arith.mulf %103, %102 : vector<1x1xf32>
    %105 = math.exp %104 : vector<1x1xf32>
    %106 = vector.broadcast %101 : vector<1x1xf32> to vector<16x32xf32>
    %107 = arith.subf %96, %106 : vector<16x32xf32>
    %cst_49 = arith.constant 8.000000e+00 : f32
    %108 = vector.broadcast %cst_49 : f32 to vector<16x32xf32>
    %109 = arith.mulf %108, %107 : vector<16x32xf32>
    %110 = math.exp %109 : vector<16x32xf32>
    %111 = arith.truncf %110 : vector<16x32xf32> to vector<16x32xbf16>
    %cst_50 = arith.constant dense<0.000000e+00> : vector<8x32xf32>
    %112 = tpu.matmul %58, %111, %cst_50 {dimension_numbers = #tpu.dot_dimension_numbers<[0], [0], [1], [1], [0, 1, 1, 1], [], []>} : vector<16x8xbf16>, vector<16x32xbf16>, vector<8x32xf32> -> vector<8x32xf32>
    %113 = vector.broadcast %105 : vector<1x1xf32> to vector<8x32xf32>
    %114 = arith.mulf %51, %113 : vector<8x32xf32>
    %115 = arith.addf %114, %112 : vector<8x32xf32>
    %cst_51 = arith.constant 1.000000e-16 : f32
    %116 = vector.broadcast %cst_51 : f32 to vector<8x32xf32>
    %117 = arith.addf %115, %116 : vector<8x32xf32>
    %118 = math.log %117 : vector<8x32xf32>
    %cst_52 = arith.constant 1.250000e-01 : f32
    %119 = vector.broadcast %cst_52 : f32 to vector<8x32xf32>
    %120 = arith.mulf %119, %118 : vector<8x32xf32>
    %121 = vector.broadcast %101 : vector<1x1xf32> to vector<8x32xf32>
    %122 = arith.addf %120, %121 : vector<8x32xf32>
    %123 = arith.truncf %122 : vector<8x32xf32> to vector<8x32xbf16>
    %c0_53 = arith.constant 0 : index
    %c0_54 = arith.constant 0 : index
    %124 = vector.load %arg13[%c0_53, %c0_54] : memref<32x64xbf16, #tpu.memory_space<vmem>>, vector<32x64xbf16>
    %cst_55 = arith.constant dense<0.000000e+00> : vector<8x64xf32>
    %125 = tpu.matmul %123, %124, %cst_55 {dimension_numbers = #tpu.dot_dimension_numbers<[1], [0], [0], [1], [0, 0, 1, 1], [], []>} : vector<8x32xbf16>, vector<32x64xbf16>, vector<8x64xf32> -> vector<8x64xf32>
    %c0_56 = arith.constant 0 : index
    %c0_57 = arith.constant 0 : index
    %126 = vector.load %arg14[%c0_56, %c0_57] : memref<32x64xbf16, #tpu.memory_space<vmem>>, vector<32x64xbf16>
    %cst_58 = arith.constant dense<0.000000e+00> : vector<8x64xf32>
    %127 = tpu.matmul %1, %126, %cst_58 {dimension_numbers = #tpu.dot_dimension_numbers<[1], [0], [0], [1], [0, 0, 1, 1], [], []>} : vector<8x32xbf16>, vector<32x64xbf16>, vector<8x64xf32> -> vector<8x64xf32>
    %128 = arith.addf %125, %127 : vector<8x64xf32>
    %c0_59 = arith.constant 0 : index
    %c0_60 = arith.constant 0 : index
    %129 = vector.load %arg15[%c0_59, %c0_60] : memref<1x64xf32, #tpu.memory_space<vmem>>, vector<1x64xf32>
    %130 = vector.broadcast %129 : vector<1x64xf32> to vector<8x64xf32>
    %131 = arith.addf %128, %130 : vector<8x64xf32>
    %cst_61 = arith.constant 0.000000e+00 : f32
    %132 = vector.broadcast %cst_61 : f32 to vector<8x64xf32>
    %133 = arith.maximumf %131, %132 : vector<8x64xf32>
    %134 = arith.truncf %133 : vector<8x64xf32> to vector<8x64xbf16>
    %c0_62 = arith.constant 0 : index
    %c0_63 = arith.constant 0 : index
    %135 = vector.load %arg16[%c0_62, %c0_63] : memref<64x32xbf16, #tpu.memory_space<vmem>>, vector<64x32xbf16>
    %cst_64 = arith.constant dense<0.000000e+00> : vector<8x32xf32>
    %136 = tpu.matmul %134, %135, %cst_64 {dimension_numbers = #tpu.dot_dimension_numbers<[1], [0], [0], [1], [0, 0, 1, 1], [], []>} : vector<8x64xbf16>, vector<64x32xbf16>, vector<8x32xf32> -> vector<8x32xf32>
    %c0_65 = arith.constant 0 : index
    %c0_66 = arith.constant 0 : index
    %137 = vector.load %arg17[%c0_65, %c0_66] : memref<1x32xf32, #tpu.memory_space<vmem>>, vector<1x32xf32>
    %138 = vector.broadcast %137 : vector<1x32xf32> to vector<8x32xf32>
    %139 = arith.addf %136, %138 : vector<8x32xf32>
    %c1_i32 = arith.constant 1 : i32
    %140 = arith.truncf %139 : vector<8x32xf32> to vector<8x32xbf16>
    %cst_67 = arith.constant -1.000000e+30 : f32
    %141 = vector.broadcast %cst_67 : f32 to vector<1x1xf32>
    %cst_68 = arith.constant 0.000000e+00 : f32
    %142 = vector.broadcast %cst_68 : f32 to vector<8x32xf32>
    %c0_69 = arith.constant 0 : index
    %c0_70 = arith.constant 0 : index
    %143 = vector.load %arg0[%c0_69, %c0_70] : memref<8x1xi32, #tpu.memory_space<vmem>>, vector<8x1xi32>
    %144 = tpu.iota {dimensions = array<i32: 1>} : vector<8x8xi32>
    %145 = vector.broadcast %143 : vector<8x1xi32> to vector<8x8xi32>
    %146 = arith.cmpi eq, %144, %145 : vector<8x8xi32>
    %147 = arith.extui %146 : vector<8x8xi1> to vector<8x8xi32>
    %148 = arith.sitofp %147 : vector<8x8xi32> to vector<8x8xf32>
    %149 = arith.truncf %148 : vector<8x8xf32> to vector<8x8xbf16>
    %cst_71 = arith.constant dense<0.000000e+00> : vector<8x32xf32>
    %150 = tpu.matmul %149, %140, %cst_71 {dimension_numbers = #tpu.dot_dimension_numbers<[1], [0], [0], [1], [0, 0, 1, 1], [], []>} : vector<8x8xbf16>, vector<8x32xbf16>, vector<8x32xf32> -> vector<8x32xf32>
    %c0_72 = arith.constant 0 : index
    %c0_73 = arith.constant 0 : index
    %151 = vector.load %arg2[%c0_72, %c0_73] : memref<32x32xbf16, #tpu.memory_space<vmem>>, vector<32x32xbf16>
    %152 = arith.truncf %150 : vector<8x32xf32> to vector<8x32xbf16>
    %cst_74 = arith.constant dense<0.000000e+00> : vector<8x32xf32>
    %153 = tpu.matmul %152, %151, %cst_74 {dimension_numbers = #tpu.dot_dimension_numbers<[1], [0], [0], [1], [0, 0, 1, 1], [], []>} : vector<8x32xbf16>, vector<32x32xbf16>, vector<8x32xf32> -> vector<8x32xf32>
    %c0_75 = arith.constant 0 : index
    %c0_76 = arith.constant 0 : index
    %154 = vector.load %arg1[%c0_75, %c0_76] : memref<1x32xf32, #tpu.memory_space<vmem>>, vector<1x32xf32>
    %155 = vector.broadcast %154 : vector<1x32xf32> to vector<8x32xf32>
    %156 = arith.addf %153, %155 : vector<8x32xf32>
    %cst_77 = arith.constant 0.000000e+00 : f32
    %157 = vector.broadcast %cst_77 : f32 to vector<8x32xf32>
    %158 = arith.maximumf %156, %157 : vector<8x32xf32>
    %159 = arith.truncf %158 : vector<8x32xf32> to vector<8x32xbf16>
    %160 = tpu.iota {dimensions = array<i32: 0>} : vector<8x1xi32>
    %c4_i32_78 = arith.constant 4 : i32
    %161 = vector.broadcast %c4_i32_78 : i32 to vector<8x1xi32>
    %162 = arith.cmpi slt, %160, %161 : vector<8x1xi32>
    %c0_79 = arith.constant 0 : index
    %c0_80 = arith.constant 0 : index
    %163 = vector.load %arg3[%c0_79, %c0_80] : memref<32x32xbf16, #tpu.memory_space<vmem>>, vector<32x32xbf16>
    %c0_81 = arith.constant 0 : index
    %c0_82 = arith.constant 0 : index
    %164 = vector.load %arg4[%c0_81, %c0_82] : memref<1x32xf32, #tpu.memory_space<vmem>>, vector<1x32xf32>
    %cst_83 = arith.constant dense<0.000000e+00> : vector<8x32xf32>
    %165 = tpu.matmul %159, %163, %cst_83 {dimension_numbers = #tpu.dot_dimension_numbers<[1], [0], [0], [1], [0, 0, 1, 1], [], []>} : vector<8x32xbf16>, vector<32x32xbf16>, vector<8x32xf32> -> vector<8x32xf32>
    %166 = vector.broadcast %164 : vector<1x32xf32> to vector<8x32xf32>
    %167 = arith.addf %165, %166 : vector<8x32xf32>
    %cst_84 = arith.constant -1.000000e+30 : f32
    %168 = vector.shape_cast %162 : vector<8x1xi1> to vector<8x1xi1>
    %169 = vector.broadcast %168 : vector<8x1xi1> to vector<8x32xi1>
    %170 = vector.broadcast %cst_84 : f32 to vector<8x32xf32>
    %171 = arith.select %169, %167, %170 : vector<8x32xi1>, vector<8x32xf32>
    %cst_85 = arith.constant dense<0xFF800000> : vector<8xf32>
    %172 = vector.multi_reduction <maximumf>, %171, %cst_85 [1] : vector<8x32xf32> to vector<8xf32>
    %173 = vector.shape_cast %172 : vector<8xf32> to vector<8x1xf32>
    %cst_86 = arith.constant dense<0xFF800000> : vector<1xf32>
    %174 = vector.multi_reduction <maximumf>, %173, %cst_86 [0] : vector<8x1xf32> to vector<1xf32>
    %175 = vector.shape_cast %174 : vector<1xf32> to vector<1x1xf32>
    %176 = arith.maximumf %141, %175 : vector<1x1xf32>
    %177 = arith.subf %141, %176 : vector<1x1xf32>
    %cst_87 = arith.constant 8.000000e+00 : f32
    %178 = vector.broadcast %cst_87 : f32 to vector<1x1xf32>
    %179 = arith.mulf %178, %177 : vector<1x1xf32>
    %180 = math.exp %179 : vector<1x1xf32>
    %181 = vector.broadcast %176 : vector<1x1xf32> to vector<8x32xf32>
    %182 = arith.subf %171, %181 : vector<8x32xf32>
    %cst_88 = arith.constant 8.000000e+00 : f32
    %183 = vector.broadcast %cst_88 : f32 to vector<8x32xf32>
    %184 = arith.mulf %183, %182 : vector<8x32xf32>
    %185 = math.exp %184 : vector<8x32xf32>
    %186 = arith.truncf %185 : vector<8x32xf32> to vector<8x32xbf16>
    %cst_89 = arith.constant dense<0.000000e+00> : vector<8x32xf32>
    %187 = tpu.matmul %149, %186, %cst_89 {dimension_numbers = #tpu.dot_dimension_numbers<[0], [0], [1], [1], [0, 1, 1, 1], [], []>} : vector<8x8xbf16>, vector<8x32xbf16>, vector<8x32xf32> -> vector<8x32xf32>
    %188 = vector.broadcast %180 : vector<1x1xf32> to vector<8x32xf32>
    %189 = arith.mulf %142, %188 : vector<8x32xf32>
    %190 = arith.addf %189, %187 : vector<8x32xf32>
    %c0_90 = arith.constant 0 : index
    %c0_91 = arith.constant 0 : index
    %191 = vector.load %arg5[%c0_90, %c0_91] : memref<16x1xi32, #tpu.memory_space<vmem>>, vector<16x1xi32>
    %192 = tpu.iota {dimensions = array<i32: 1>} : vector<16x8xi32>
    %193 = vector.broadcast %191 : vector<16x1xi32> to vector<16x8xi32>
    %194 = arith.cmpi eq, %192, %193 : vector<16x8xi32>
    %195 = arith.extui %194 : vector<16x8xi1> to vector<16x8xi32>
    %196 = arith.sitofp %195 : vector<16x8xi32> to vector<16x8xf32>
    %197 = arith.truncf %196 : vector<16x8xf32> to vector<16x8xbf16>
    %cst_92 = arith.constant dense<0.000000e+00> : vector<16x32xf32>
    %198 = tpu.matmul %197, %140, %cst_92 {dimension_numbers = #tpu.dot_dimension_numbers<[1], [0], [0], [1], [0, 0, 1, 1], [], []>} : vector<16x8xbf16>, vector<8x32xbf16>, vector<16x32xf32> -> vector<16x32xf32>
    %c0_93 = arith.constant 0 : index
    %c0_94 = arith.constant 0 : index
    %199 = vector.load %arg7[%c0_93, %c0_94] : memref<32x64xbf16, #tpu.memory_space<vmem>>, vector<32x64xbf16>
    %200 = vector.extract_strided_slice %198 {offsets = [0, 0], sizes = [8, 32], strides = [1, 1]} : vector<16x32xf32> to vector<8x32xf32>
    %201 = arith.truncf %200 : vector<8x32xf32> to vector<8x32xbf16>
    %cst_95 = arith.constant dense<0.000000e+00> : vector<8x64xf32>
    %202 = tpu.matmul %201, %199, %cst_95 {dimension_numbers = #tpu.dot_dimension_numbers<[1], [0], [0], [1], [0, 0, 1, 1], [], []>} : vector<8x32xbf16>, vector<32x64xbf16>, vector<8x64xf32> -> vector<8x64xf32>
    %c0_96 = arith.constant 0 : index
    %c0_97 = arith.constant 0 : index
    %203 = vector.load %arg10[%c0_96, %c0_97] : memref<32x64xbf16, #tpu.memory_space<vmem>>, vector<32x64xbf16>
    %204 = vector.extract_strided_slice %198 {offsets = [8, 0], sizes = [8, 32], strides = [1, 1]} : vector<16x32xf32> to vector<8x32xf32>
    %205 = arith.truncf %204 : vector<8x32xf32> to vector<8x32xbf16>
    %cst_98 = arith.constant dense<0.000000e+00> : vector<8x64xf32>
    %206 = tpu.matmul %205, %203, %cst_98 {dimension_numbers = #tpu.dot_dimension_numbers<[1], [0], [0], [1], [0, 0, 1, 1], [], []>} : vector<8x32xbf16>, vector<32x64xbf16>, vector<8x64xf32> -> vector<8x64xf32>
    %207 = arith.addf %202, %206 : vector<8x64xf32>
    %c0_99 = arith.constant 0 : index
    %c0_100 = arith.constant 0 : index
    %208 = vector.load %arg6[%c0_99, %c0_100] : memref<1x64xf32, #tpu.memory_space<vmem>>, vector<1x64xf32>
    %209 = vector.broadcast %208 : vector<1x64xf32> to vector<8x64xf32>
    %210 = arith.addf %207, %209 : vector<8x64xf32>
    %cst_101 = arith.constant 0.000000e+00 : f32
    %211 = vector.broadcast %cst_101 : f32 to vector<8x64xf32>
    %212 = arith.maximumf %210, %211 : vector<8x64xf32>
    %213 = arith.truncf %212 : vector<8x64xf32> to vector<8x64xbf16>
    %214 = tpu.iota {dimensions = array<i32: 0>} : vector<8x1xi32>
    %c3_i32_102 = arith.constant 3 : i32
    %215 = vector.broadcast %c3_i32_102 : i32 to vector<8x1xi32>
    %216 = arith.cmpi slt, %214, %215 : vector<8x1xi32>
    %c0_103 = arith.constant 0 : index
    %c0_104 = arith.constant 0 : index
    %217 = vector.load %arg8[%c0_103, %c0_104] : memref<64x32xbf16, #tpu.memory_space<vmem>>, vector<64x32xbf16>
    %c0_105 = arith.constant 0 : index
    %c0_106 = arith.constant 0 : index
    %218 = vector.load %arg9[%c0_105, %c0_106] : memref<1x32xf32, #tpu.memory_space<vmem>>, vector<1x32xf32>
    %cst_107 = arith.constant dense<0.000000e+00> : vector<8x32xf32>
    %219 = tpu.matmul %213, %217, %cst_107 {dimension_numbers = #tpu.dot_dimension_numbers<[1], [0], [0], [1], [0, 0, 1, 1], [], []>} : vector<8x64xbf16>, vector<64x32xbf16>, vector<8x32xf32> -> vector<8x32xf32>
    %220 = vector.broadcast %218 : vector<1x32xf32> to vector<8x32xf32>
    %221 = arith.addf %219, %220 : vector<8x32xf32>
    %cst_108 = arith.constant -1.000000e+30 : f32
    %222 = vector.shape_cast %216 : vector<8x1xi1> to vector<8x1xi1>
    %223 = vector.broadcast %222 : vector<8x1xi1> to vector<8x32xi1>
    %224 = vector.broadcast %cst_108 : f32 to vector<8x32xf32>
    %225 = arith.select %223, %221, %224 : vector<8x32xi1>, vector<8x32xf32>
    %c0_109 = arith.constant 0 : index
    %c0_110 = arith.constant 0 : index
    %226 = vector.load %arg11[%c0_109, %c0_110] : memref<64x32xbf16, #tpu.memory_space<vmem>>, vector<64x32xbf16>
    %c0_111 = arith.constant 0 : index
    %c0_112 = arith.constant 0 : index
    %227 = vector.load %arg12[%c0_111, %c0_112] : memref<1x32xf32, #tpu.memory_space<vmem>>, vector<1x32xf32>
    %cst_113 = arith.constant dense<0.000000e+00> : vector<8x32xf32>
    %228 = tpu.matmul %213, %226, %cst_113 {dimension_numbers = #tpu.dot_dimension_numbers<[1], [0], [0], [1], [0, 0, 1, 1], [], []>} : vector<8x64xbf16>, vector<64x32xbf16>, vector<8x32xf32> -> vector<8x32xf32>
    %229 = vector.broadcast %227 : vector<1x32xf32> to vector<8x32xf32>
    %230 = arith.addf %228, %229 : vector<8x32xf32>
    %cst_114 = arith.constant -1.000000e+30 : f32
    %231 = vector.shape_cast %216 : vector<8x1xi1> to vector<8x1xi1>
    %232 = vector.broadcast %231 : vector<8x1xi1> to vector<8x32xi1>
    %233 = vector.broadcast %cst_114 : f32 to vector<8x32xf32>
    %234 = arith.select %232, %230, %233 : vector<8x32xi1>, vector<8x32xf32>
    %235 = tpu.concatenate %225, %234 in 0 : vector<8x32xf32>, vector<8x32xf32> -> vector<16x32xf32>
    %cst_115 = arith.constant dense<0xFF800000> : vector<16xf32>
    %236 = vector.multi_reduction <maximumf>, %235, %cst_115 [1] : vector<16x32xf32> to vector<16xf32>
    %237 = vector.shape_cast %236 : vector<16xf32> to vector<16x1xf32>
    %cst_116 = arith.constant dense<0xFF800000> : vector<1xf32>
    %238 = vector.multi_reduction <maximumf>, %237, %cst_116 [0] : vector<16x1xf32> to vector<1xf32>
    %239 = vector.shape_cast %238 : vector<1xf32> to vector<1x1xf32>
    %240 = arith.maximumf %176, %239 : vector<1x1xf32>
    %241 = arith.subf %176, %240 : vector<1x1xf32>
    %cst_117 = arith.constant 8.000000e+00 : f32
    %242 = vector.broadcast %cst_117 : f32 to vector<1x1xf32>
    %243 = arith.mulf %242, %241 : vector<1x1xf32>
    %244 = math.exp %243 : vector<1x1xf32>
    %245 = vector.broadcast %240 : vector<1x1xf32> to vector<16x32xf32>
    %246 = arith.subf %235, %245 : vector<16x32xf32>
    %cst_118 = arith.constant 8.000000e+00 : f32
    %247 = vector.broadcast %cst_118 : f32 to vector<16x32xf32>
    %248 = arith.mulf %247, %246 : vector<16x32xf32>
    %249 = math.exp %248 : vector<16x32xf32>
    %250 = arith.truncf %249 : vector<16x32xf32> to vector<16x32xbf16>
    %cst_119 = arith.constant dense<0.000000e+00> : vector<8x32xf32>
    %251 = tpu.matmul %197, %250, %cst_119 {dimension_numbers = #tpu.dot_dimension_numbers<[0], [0], [1], [1], [0, 1, 1, 1], [], []>} : vector<16x8xbf16>, vector<16x32xbf16>, vector<8x32xf32> -> vector<8x32xf32>
    %252 = vector.broadcast %244 : vector<1x1xf32> to vector<8x32xf32>
    %253 = arith.mulf %190, %252 : vector<8x32xf32>
    %254 = arith.addf %253, %251 : vector<8x32xf32>
    %cst_120 = arith.constant 1.000000e-16 : f32
    %255 = vector.broadcast %cst_120 : f32 to vector<8x32xf32>
    %256 = arith.addf %254, %255 : vector<8x32xf32>
    %257 = math.log %256 : vector<8x32xf32>
    %cst_121 = arith.constant 1.250000e-01 : f32
    %258 = vector.broadcast %cst_121 : f32 to vector<8x32xf32>
    %259 = arith.mulf %258, %257 : vector<8x32xf32>
    %260 = vector.broadcast %240 : vector<1x1xf32> to vector<8x32xf32>
    %261 = arith.addf %259, %260 : vector<8x32xf32>
    %262 = arith.truncf %261 : vector<8x32xf32> to vector<8x32xbf16>
    %c0_122 = arith.constant 0 : index
    %c0_123 = arith.constant 0 : index
    %263 = vector.load %arg13[%c0_122, %c0_123] : memref<32x64xbf16, #tpu.memory_space<vmem>>, vector<32x64xbf16>
    %cst_124 = arith.constant dense<0.000000e+00> : vector<8x64xf32>
    %264 = tpu.matmul %262, %263, %cst_124 {dimension_numbers = #tpu.dot_dimension_numbers<[1], [0], [0], [1], [0, 0, 1, 1], [], []>} : vector<8x32xbf16>, vector<32x64xbf16>, vector<8x64xf32> -> vector<8x64xf32>
    %c0_125 = arith.constant 0 : index
    %c0_126 = arith.constant 0 : index
    %265 = vector.load %arg14[%c0_125, %c0_126] : memref<32x64xbf16, #tpu.memory_space<vmem>>, vector<32x64xbf16>
    %cst_127 = arith.constant dense<0.000000e+00> : vector<8x64xf32>
    %266 = tpu.matmul %140, %265, %cst_127 {dimension_numbers = #tpu.dot_dimension_numbers<[1], [0], [0], [1], [0, 0, 1, 1], [], []>} : vector<8x32xbf16>, vector<32x64xbf16>, vector<8x64xf32> -> vector<8x64xf32>
    %267 = arith.addf %264, %266 : vector<8x64xf32>
    %c0_128 = arith.constant 0 : index
    %c0_129 = arith.constant 0 : index
    %268 = vector.load %arg15[%c0_128, %c0_129] : memref<1x64xf32, #tpu.memory_space<vmem>>, vector<1x64xf32>
    %269 = vector.broadcast %268 : vector<1x64xf32> to vector<8x64xf32>
    %270 = arith.addf %267, %269 : vector<8x64xf32>
    %cst_130 = arith.constant 0.000000e+00 : f32
    %271 = vector.broadcast %cst_130 : f32 to vector<8x64xf32>
    %272 = arith.maximumf %270, %271 : vector<8x64xf32>
    %273 = arith.truncf %272 : vector<8x64xf32> to vector<8x64xbf16>
    %c0_131 = arith.constant 0 : index
    %c0_132 = arith.constant 0 : index
    %274 = vector.load %arg16[%c0_131, %c0_132] : memref<64x32xbf16, #tpu.memory_space<vmem>>, vector<64x32xbf16>
    %cst_133 = arith.constant dense<0.000000e+00> : vector<8x32xf32>
    %275 = tpu.matmul %273, %274, %cst_133 {dimension_numbers = #tpu.dot_dimension_numbers<[1], [0], [0], [1], [0, 0, 1, 1], [], []>} : vector<8x64xbf16>, vector<64x32xbf16>, vector<8x32xf32> -> vector<8x32xf32>
    %c0_134 = arith.constant 0 : index
    %c0_135 = arith.constant 0 : index
    %276 = vector.load %arg17[%c0_134, %c0_135] : memref<1x32xf32, #tpu.memory_space<vmem>>, vector<1x32xf32>
    %277 = vector.broadcast %276 : vector<1x32xf32> to vector<8x32xf32>
    %278 = arith.addf %275, %277 : vector<8x32xf32>
    %c0_136 = arith.constant 0 : index
    %c0_137 = arith.constant 0 : index
    %279 = vector.load %arg19[%c0_136, %c0_137] : memref<8x32xf32, #tpu.memory_space<vmem>>, vector<8x32xf32>
    tpu.vector_store %arg19[%c0_136, %c0_137], %278 {strides = array<i32>} : memref<8x32xf32, #tpu.memory_space<vmem>>, vector<8x32xf32>,
    return
  }
}

</mosaic_0001>

<llo_original>
// kernel: tpu_custom_call.1
$region0: #{tpu_custom_call.1}
  #allocation0 [shape = 'u32[]', space=smem, size = 0x4, offset = 0x4, fixed_abs, tag = 'smem constant byte address 0x4 - core index']
  #allocation1 [shape = 'u32[144,128]{1,0:T(1,128)}', space=vmem, size = 0x12000, scoped, tag = 'internal scratch']
  %s0 = inlined_call_operand.vmem [shape: s32[8,1], index: 0, kind: input, shape index: {}]
  %s1 = inlined_call_operand.vmem [shape: f32[1,32], index: 1, kind: input, shape index: {}]
  %s2 = inlined_call_operand.vmem [shape: bf16[32,32], index: 2, kind: input, shape index: {}]
  %s3 = inlined_call_operand.vmem [shape: bf16[32,32], index: 3, kind: input, shape index: {}]
  %s4 = inlined_call_operand.vmem [shape: f32[1,32], index: 4, kind: input, shape index: {}]
  %s5 = inlined_call_operand.vmem [shape: s32[16,1], index: 5, kind: input, shape index: {}]
  %s6 = inlined_call_operand.vmem [shape: f32[1,64], index: 6, kind: input, shape index: {}]
  %s7 = inlined_call_operand.vmem [shape: bf16[32,64], index: 7, kind: input, shape index: {}]
  %s8 = inlined_call_operand.vmem [shape: bf16[64,32], index: 8, kind: input, shape index: {}]
  %s9 = inlined_call_operand.vmem [shape: f32[1,32], index: 9, kind: input, shape index: {}]
  %s10 = inlined_call_operand.vmem [shape: bf16[32,64], index: 10, kind: input, shape index: {}]
  %s11 = inlined_call_operand.vmem [shape: bf16[64,32], index: 11, kind: input, shape index: {}]
  %s12 = inlined_call_operand.vmem [shape: f32[1,32], index: 12, kind: input, shape index: {}]
  %s13 = inlined_call_operand.vmem [shape: bf16[32,64], index: 13, kind: input, shape index: {}]
  %s14 = inlined_call_operand.vmem [shape: bf16[32,64], index: 14, kind: input, shape index: {}]
  %s15 = inlined_call_operand.vmem [shape: f32[1,64], index: 15, kind: input, shape index: {}]
  %s16 = inlined_call_operand.vmem [shape: bf16[64,32], index: 16, kind: input, shape index: {}]
  %s17 = inlined_call_operand.vmem [shape: f32[1,32], index: 17, kind: input, shape index: {}]
  %s18 = inlined_call_operand.vmem [shape: f32[8,32], index: 18, kind: input, shape index: {}]
  %s19 = inlined_call_operand.hbm [shape: f32[8,32], index: 19, kind: output, shape index: {}]
  %s20 = sld [smem:[#allocation0]]
  $region86: #{tpu_custom_call.1} parent=0
    _
  %s22 = ssub.s32 1, %s20
  %s23 = scalar_select 0, %s22, %s20
  $region1: #{tpu_custom_call.1} parent=0
    #allocation2 [shape = 'u8[4096]{0}', space=vmem, size = 0x1000, scoped, tag = 'output window, operand 0, single buffered']
    #allocation3 [shape = 's32[1]{0}', space=sflag, size = 0x4, scoped, tag = 'scoped memory for tpu_custom_call.1']
    %24 = vsyncpa [#allocation3], 0
    // Predicated region
    $region2: #{tpu_custom_call.1} parent=1 // pred_check
      _
    $region3: #{tpu_custom_call.1} parent=1 // pred_check_branch
      %26 = sbr.rel (0) target = $region5
    $region4: #{tpu_custom_call.1} parent=1 // pred_region
      _
    $region5: #{tpu_custom_call.1} parent=1 // pred_fallthru
      _
    // Predicated region
    $region6: #{tpu_custom_call.1} parent=1 // pred_check
      _
    $region7: #{tpu_custom_call.1} parent=1 // pred_check_branch
      %28 = sbr.rel (0) target = $region9
    $region8: #{tpu_custom_call.1} parent=1 // pred_region
      _
    $region9: #{tpu_custom_call.1} parent=1 // pred_fallthru
      _
    // Predicated region
    $region10: #{tpu_custom_call.1} parent=1 // pred_check
      _
    $region11: #{tpu_custom_call.1} parent=1 // pred_check_branch
      %30 = sbr.rel (0) target = $region13
    $region12: #{tpu_custom_call.1} parent=1 // pred_region
      _
    $region13: #{tpu_custom_call.1} parent=1 // pred_fallthru
      _
    // Predicated region
    $region14: #{tpu_custom_call.1} parent=1 // pred_check
      _
    $region15: #{tpu_custom_call.1} parent=1 // pred_check_branch
      %32 = sbr.rel (0) target = $region17
    $region16: #{tpu_custom_call.1} parent=1 // pred_region
      _
    $region17: #{tpu_custom_call.1} parent=1 // pred_fallthru
      _
    // Predicated region
    $region18: #{tpu_custom_call.1} parent=1 // pred_check
      _
    $region19: #{tpu_custom_call.1} parent=1 // pred_check_branch
      %34 = sbr.rel (0) target = $region21
    $region20: #{tpu_custom_call.1} parent=1 // pred_region
      _
    $region21: #{tpu_custom_call.1} parent=1 // pred_fallthru
      _
    // Predicated region
    $region22: #{tpu_custom_call.1} parent=1 // pred_check
      _
    $region23: #{tpu_custom_call.1} parent=1 // pred_check_branch
      %36 = sbr.rel (0) target = $region25
    $region24: #{tpu_custom_call.1} parent=1 // pred_region
      _
    $region25: #{tpu_custom_call.1} parent=1 // pred_fallthru
      _
    // Predicated region
    $region26: #{tpu_custom_call.1} parent=1 // pred_check
      _
    $region27: #{tpu_custom_call.1} parent=1 // pred_check_branch
      %38 = sbr.rel (0) target = $region29
    $region28: #{tpu_custom_call.1} parent=1 // pred_region
      _
    $region29: #{tpu_custom_call.1} parent=1 // pred_fallthru
      _
    // Predicated region
    $region30: #{tpu_custom_call.1} parent=1 // pred_check
      _
    $region31: #{tpu_custom_call.1} parent=1 // pred_check_branch
      %40 = sbr.rel (0) target = $region33
    $region32: #{tpu_custom_call.1} parent=1 // pred_region
      _
    $region33: #{tpu_custom_call.1} parent=1 // pred_fallthru
      _
    // Predicated region
    $region34: #{tpu_custom_call.1} parent=1 // pred_check
      _
    $region35: #{tpu_custom_call.1} parent=1 // pred_check_branch
      %42 = sbr.rel (0) target = $region37
    $region36: #{tpu_custom_call.1} parent=1 // pred_region
      _
    $region37: #{tpu_custom_call.1} parent=1 // pred_fallthru
      _
    // Predicated region
    $region38: #{tpu_custom_call.1} parent=1 // pred_check
      _
    $region39: #{tpu_custom_call.1} parent=1 // pred_check_branch
      %44 = sbr.rel (0) target = $region41
    $region40: #{tpu_custom_call.1} parent=1 // pred_region
      _
    $region41: #{tpu_custom_call.1} parent=1 // pred_fallthru
      _
    // Predicated region
    $region42: #{tpu_custom_call.1} parent=1 // pred_check
      _
    $region43: #{tpu_custom_call.1} parent=1 // pred_check_branch
      %46 = sbr.rel (0) target = $region45
    $region44: #{tpu_custom_call.1} parent=1 // pred_region
      _
    $region45: #{tpu_custom_call.1} parent=1 // pred_fallthru
      _
    // Predicated region
    $region46: #{tpu_custom_call.1} parent=1 // pred_check
      _
    $region47: #{tpu_custom_call.1} parent=1 // pred_check_branch
      %48 = sbr.rel (0) target = $region49
    $region48: #{tpu_custom_call.1} parent=1 // pred_region
      _
    $region49: #{tpu_custom_call.1} parent=1 // pred_fallthru
      _
    // Predicated region
    $region50: #{tpu_custom_call.1} parent=1 // pred_check
      _
    $region51: #{tpu_custom_call.1} parent=1 // pred_check_branch
      %50 = sbr.rel (0) target = $region53
    $region52: #{tpu_custom_call.1} parent=1 // pred_region
      _
    $region53: #{tpu_custom_call.1} parent=1 // pred_fallthru
      _
    // Predicated region
    $region54: #{tpu_custom_call.1} parent=1 // pred_check
      _
    $region55: #{tpu_custom_call.1} parent=1 // pred_check_branch
      %52 = sbr.rel (0) target = $region57
    $region56: #{tpu_custom_call.1} parent=1 // pred_region
      _
    $region57: #{tpu_custom_call.1} parent=1 // pred_fallthru
      _
    // Predicated region
    $region58: #{tpu_custom_call.1} parent=1 // pred_check
      _
    $region59: #{tpu_custom_call.1} parent=1 // pred_check_branch
      %54 = sbr.rel (0) target = $region61
    $region60: #{tpu_custom_call.1} parent=1 // pred_region
      _
    $region61: #{tpu_custom_call.1} parent=1 // pred_fallthru
      _
    // Predicated region
    $region62: #{tpu_custom_call.1} parent=1 // pred_check
      _
    $region63: #{tpu_custom_call.1} parent=1 // pred_check_branch
      %56 = sbr.rel (0) target = $region65
    $region64: #{tpu_custom_call.1} parent=1 // pred_region
      _
    $region65: #{tpu_custom_call.1} parent=1 // pred_fallthru
      _
    // Predicated region
    $region66: #{tpu_custom_call.1} parent=1 // pred_check
      _
    $region67: #{tpu_custom_call.1} parent=1 // pred_check_branch
      %58 = sbr.rel (0) target = $region69
    $region68: #{tpu_custom_call.1} parent=1 // pred_region
      _
    $region69: #{tpu_custom_call.1} parent=1 // pred_fallthru
      _
    // Predicated region
    $region70: #{tpu_custom_call.1} parent=1 // pred_check
      _
    $region71: #{tpu_custom_call.1} parent=1 // pred_check_branch
      %60 = sbr.rel (0) target = $region73
    $region72: #{tpu_custom_call.1} parent=1 // pred_region
      _
    $region73: #{tpu_custom_call.1} parent=1 // pred_fallthru
      _
    // Predicated region
    $region74: #{tpu_custom_call.1} parent=1 // pred_check
      _
    $region75: #{tpu_custom_call.1} parent=1 // pred_check_branch
      %62 = sbr.rel (0) target = $region77
    $region76: #{tpu_custom_call.1} parent=1 // pred_region
      _
    $region77: #{tpu_custom_call.1} parent=1 // pred_fallthru
      _
    %v64 = vld [vmem:[%s18] sm:$0xff]
    %v65 = vpack.c.bf16 %v64, %v64
    %v66 = vld [vmem:[%s0] sm:$0xff]
    %v67 = vlaneseq
    %v68 = vand.u32 %v67, 127
    %69 = vset.pattern.permute.xlu0 0
    %70 = vperm.xlu0 %69, %v66
    %v71 = vpop.permute.xlu0 %70
    %vm72 = vcmp.eq.s32.totalorder %v68, %v71
    %v73 = vsel %vm72, 1, 0
    %v74 = vcvt.s32.f32 %v73
    %v75 = vpack.c.bf16 %v74, %v74
    %vm76 = vcmask 64512
    %v78 = vsel %vm76, %v75, 0
    %vm80 = vcmask 1043456
    %v82 = vsel %vm80, %v65, 0
    %84 = vmatprep.subr.bf16.mxu0 0
    %85 = vmatpush1.bf16.msra.mxu0 0
    %86 = vmatprep.subr.bf16.mxu0 0
    %87 = vmatpush1.bf16.msra.mxu0 0
    %88 = vmatprep.subr.bf16.mxu0 0
    %89 = vmatpush1.bf16.msra.mxu0 0
    %90 = vmatprep.subr.bf16.mxu0 0
    %91 = vmatpush1.bf16.msra.mxu0 0
    %92 = vmatprep.subr.bf16.mxu0 0
    %93 = vmatpush1.bf16.msra.mxu0 0
    %94 = vmatprep.subr.bf16.mxu0 0
    %95 = vmatpush1.bf16.msra.mxu0 0
    %96 = vmatprep.subr.bf16.mxu0 0
    %97 = vmatpush1.bf16.msra.mxu0 0
    %98 = vmatprep.subr.bf16.mxu0 0
    %99 = vmatpush1.bf16.msra.mxu0 %v82
    %100 = vmatprep.subr.bf16.mxu0 0
    %101 = vmatpush2.bf16.msra.mxu0 0
    %102 = vmatprep.subr.bf16.mxu0 0
    %103 = vmatpush2.bf16.msra.mxu0 0
    %104 = vmatprep.subr.bf16.mxu0 0
    %105 = vmatpush2.bf16.msra.mxu0 0
    %106 = vmatprep.subr.bf16.mxu0 0
    %107 = vmatpush2.bf16.msra.mxu0 0
    %108 = vmatprep.subr.bf16.mxu0 0
    %109 = vmatpush2.bf16.msra.mxu0 0
    %110 = vmatprep.subr.bf16.mxu0 0
    %111 = vmatpush2.bf16.msra.mxu0 0
    %112 = vmatprep.subr.bf16.mxu0 0
    %113 = vmatpush2.bf16.msra.mxu0 0
    %114 = vmatprep.subr.bf16.mxu0 0
    %115 = vmatpush2.bf16.msra.mxu0 0
    %116 = vmatprep.mubr.bf16.mxu0 0
    %117 = vmatmul.mubr.bf16.gmra.mxu0 %v78
    %v118 = vpop.f32.mrf.mxu0
    %v119 = vadd.f32 0.0, %v118
    %v120 = vpop.f32.mrf.mxu0
    %v121 = vpop.f32.mrf.mxu0
    %v122 = vpop.f32.mrf.mxu0
    %123 = vdwg.mxu0
    %v124 = vld [vmem:[%s2] sm:$0xf]
    %v125 = vld [vmem:[%s2 + $0x4] sm:$0xf]
    %v126 = vld [vmem:[%s2 + $0x8] sm:$0xf]
    %v127 = vld [vmem:[%s2 + $0xc] sm:$0xf]
    %v128 = vpack.c.bf16 %v119, %v119
    %v129 = vld [vmem:[%s1] sm:$0x1]
    %v131 = vlaneseq
    %v132 = vshrl.u32 %v131, 7
    %v133 = vsub.s32 0, %v132
    %v134 = vrot.slane %v129, %v133
    %v140 = vunpack.c.l.b16 %v124
    %v141 = vunpack.c.l.b16 %v125
    %v142 = vunpack.c.l.b16 %v126
    %v143 = vunpack.c.l.b16 %v127
    %v144 = vpack.c.b16 %v141, %v140
    %v145 = vpack.c.b16 %v143, %v142
    %vm148 = vcmask 261120
    %v150 = vsel %vm148, %v128, 0
    %152 = vmatprep.subr.bf16.mxu0 0
    %153 = vmatpush1.bf16.msra.mxu0 0
    %154 = vmatprep.subr.bf16.mxu0 0
    %155 = vmatpush1.bf16.msra.mxu0 0
    %156 = vmatprep.subr.bf16.mxu0 0
    %157 = vmatpush1.bf16.msra.mxu0 0
    %158 = vmatprep.subr.bf16.mxu0 0
    %159 = vmatpush1.bf16.msra.mxu0 0
    %160 = vmatprep.subr.bf16.mxu0 0
    %161 = vmatpush1.bf16.msra.mxu0 0
    %162 = vmatprep.subr.bf16.mxu0 0
    %163 = vmatpush1.bf16.msra.mxu0 0
    %164 = vmatprep.subr.bf16.mxu0 0
    %165 = vmatpush1.bf16.msra.mxu0 %v145
    %166 = vmatprep.subr.bf16.mxu0 0
    %167 = vmatpush1.bf16.msra.mxu0 %v144
    %168 = vmatprep.subr.bf16.mxu0 0
    %169 = vmatpush2.bf16.msra.mxu0 0
    %170 = vmatprep.subr.bf16.mxu0 0
    %171 = vmatpush2.bf16.msra.mxu0 0
    %172 = vmatprep.subr.bf16.mxu0 0
    %173 = vmatpush2.bf16.msra.mxu0 0
    %174 = vmatprep.subr.bf16.mxu0 0
    %175 = vmatpush2.bf16.msra.mxu0 0
    %176 = vmatprep.subr.bf16.mxu0 0
    %177 = vmatpush2.bf16.msra.mxu0 0
    %178 = vmatprep.subr.bf16.mxu0 0
    %179 = vmatpush2.bf16.msra.mxu0 0
    %180 = vmatprep.subr.bf16.mxu0 0
    %181 = vmatpush2.bf16.msra.mxu0 0
    %182 = vmatprep.subr.bf16.mxu0 0
    %183 = vmatpush2.bf16.msra.mxu0 0
    %184 = vmatprep.mubr.bf16.mxu0 0
    %185 = vmatmul.mubr.bf16.gmra.mxu0 %v150
    %v186 = vpop.f32.mrf.mxu0
    %v187 = vadd.f32 %v134, %v186
    %v188 = vpop.f32.mrf.mxu0
    %v189 = vpop.f32.mrf.mxu0
    %v190 = vpop.f32.mrf.mxu0
    %191 = vdwg.mxu0
    %v192 = vmax.f32 %v187, 0.0
    %v193 = vpack.c.bf16 %v192, %v192
    %v194 = vlaneseq
    %v195 = vshrl.u32 %v194, 7
    %vm196 = vcmp.lt.s32.totalorder %v195, 4
    %v197 = vld [vmem:[%s3] sm:$0xf]
    %v198 = vld [vmem:[%s3 + $0x4] sm:$0xf]
    %v199 = vld [vmem:[%s3 + $0x8] sm:$0xf]
    %v200 = vld [vmem:[%s3 + $0xc] sm:$0xf]
    %v201 = vld [vmem:[%s4] sm:$0x1]
    %v203 = vlaneseq
    %v204 = vshrl.u32 %v203, 7
    %v205 = vsub.s32 0, %v204
    %v206 = vrot.slane %v201, %v205
    %v212 = vunpack.c.l.b16 %v197
    %v213 = vunpack.c.l.b16 %v198
    %v214 = vunpack.c.l.b16 %v199
    %v215 = vunpack.c.l.b16 %v200
    %v216 = vpack.c.b16 %v213, %v212
    %v217 = vpack.c.b16 %v215, %v214
    %v221 = vsel %vm148, %v193, 0
    %223 = vmatprep.subr.bf16.mxu0 0
    %224 = vmatpush1.bf16.msra.mxu0 0
    %225 = vmatprep.subr.bf16.mxu0 0
    %226 = vmatpush1.bf16.msra.mxu0 0
    %227 = vmatprep.subr.bf16.mxu0 0
    %228 = vmatpush1.bf16.msra.mxu0 0
    %229 = vmatprep.subr.bf16.mxu0 0
    %230 = vmatpush1.bf16.msra.mxu0 0
    %231 = vmatprep.subr.bf16.mxu0 0
    %232 = vmatpush1.bf16.msra.mxu0 0
    %233 = vmatprep.subr.bf16.mxu0 0
    %234 = vmatpush1.bf16.msra.mxu0 0
    %235 = vmatprep.subr.bf16.mxu0 0
    %236 = vmatpush1.bf16.msra.mxu0 %v217
    %237 = vmatprep.subr.bf16.mxu0 0
    %238 = vmatpush1.bf16.msra.mxu0 %v216
    %239 = vmatprep.subr.bf16.mxu0 0
    %240 = vmatpush2.bf16.msra.mxu0 0
    %241 = vmatprep.subr.bf16.mxu0 0
    %242 = vmatpush2.bf16.msra.mxu0 0
    %243 = vmatprep.subr.bf16.mxu0 0
    %244 = vmatpush2.bf16.msra.mxu0 0
    %245 = vmatprep.subr.bf16.mxu0 0
    %246 = vmatpush2.bf16.msra.mxu0 0
    %247 = vmatprep.subr.bf16.mxu0 0
    %248 = vmatpush2.bf16.msra.mxu0 0
    %249 = vmatprep.subr.bf16.mxu0 0
    %250 = vmatpush2.bf16.msra.mxu0 0
    %251 = vmatprep.subr.bf16.mxu0 0
    %252 = vmatpush2.bf16.msra.mxu0 0
    %253 = vmatprep.subr.bf16.mxu0 0
    %254 = vmatpush2.bf16.msra.mxu0 0
    %255 = vmatprep.mubr.bf16.mxu0 0
    %256 = vmatmul.mubr.bf16.gmra.mxu0 %v221
    %v257 = vpop.f32.mrf.mxu0
    %v258 = vadd.f32 %v206, %v257
    %v259 = vpop.f32.mrf.mxu0
    %v260 = vpop.f32.mrf.mxu0
    %v261 = vpop.f32.mrf.mxu0
    %262 = vdwg.mxu0
    %v263 = vsel %vm196, 1, 0
    %vm264 = vcmp.eq.s32.totalorder %v263, 1
    %v265 = vsel %vm264, %v258, -1e+30
    %v266 = vsel %vm148, %v265, -inf
    %267 = vmax.xlane.f32.xlu0 %v266
    %v268 = vpop.xlane.xlu0 %267
    %v269 = vrot.slane %v268, 4
    %v270 = vmax.f32 %v268, %v269
    %v271 = vrot.slane %v270, 2
    %v272 = vmax.f32 %v270, %v271
    %v273 = vrot.slane %v272, 1
    %v274 = vmax.f32 %v272, %v273
    %v275 = vmax.f32 %v274, -1e+30
    %v276 = vsub.f32 -1e+30, %v275
    %v277 = vmul.f32 %v276, 8.0
    %v278 = vmul.f32 %v277, 1.442695
    %v279 = vpow.pop %v278
    %v280 = vsub.f32 %v265, %v275
    %v281 = vmul.f32 %v280, 8.0
    %v282 = vmul.f32 %v281, 1.442695
    %v283 = vpow.pop %v282
    %v284 = vpack.c.bf16 %v283, %v283
    %285 = vxpose.xlu0.c.b16.start [1/8] %v75, 128
    %286 = vxpose.xlu0.c.b16.cont [2/8] 0, 128
    %287 = vxpose.xlu0.c.b16.cont [3/8] 0, 128
    %288 = vxpose.xlu0.c.b16.cont [4/8] 0, 128
    %289 = vxpose.xlu0.c.b16.cont [5/8] 0, 128
    %290 = vxpose.xlu0.c.b16.cont [6/8] 0, 128
    %291 = vxpose.xlu0.c.b16.cont [7/8] 0, 128
    %292 = vxpose.xlu0.c.b16.end [8/8] 0, 128
    %v293 = vpop.trf.xlu0
    %v294 = vpop.trf.xlu0
    %v295 = vpop.trf.xlu0
    %v296 = vpop.trf.xlu0
    %v297 = vpop.trf.xlu0
    %v298 = vpop.trf.xlu0
    %v299 = vpop.trf.xlu0
    %v300 = vpop.trf.xlu0
    %v302 = vsel %vm76, %v293, 0
    %v305 = vsel %vm80, %v284, 0
    %307 = vmatprep.subr.bf16.mxu0 0
    %308 = vmatpush1.bf16.msra.mxu0 0
    %309 = vmatprep.subr.bf16.mxu0 0
    %310 = vmatpush1.bf16.msra.mxu0 0
    %311 = vmatprep.subr.bf16.mxu0 0
    %312 = vmatpush1.bf16.msra.mxu0 0
    %313 = vmatprep.subr.bf16.mxu0 0
    %314 = vmatpush1.bf16.msra.mxu0 0
    %315 = vmatprep.subr.bf16.mxu0 0
    %316 = vmatpush1.bf16.msra.mxu0 0
    %317 = vmatprep.subr.bf16.mxu0 0
    %318 = vmatpush1.bf16.msra.mxu0 0
    %319 = vmatprep.subr.bf16.mxu0 0
    %320 = vmatpush1.bf16.msra.mxu0 0
    %321 = vmatprep.subr.bf16.mxu0 0
    %322 = vmatpush1.bf16.msra.mxu0 %v305
    %323 = vmatprep.subr.bf16.mxu0 0
    %324 = vmatpush2.bf16.msra.mxu0 0
    %325 = vmatprep.subr.bf16.mxu0 0
    %326 = vmatpush2.bf16.msra.mxu0 0
    %327 = vmatprep.subr.bf16.mxu0 0
    %328 = vmatpush2.bf16.msra.mxu0 0
    %329 = vmatprep.subr.bf16.mxu0 0
    %330 = vmatpush2.bf16.msra.mxu0 0
    %331 = vmatprep.subr.bf16.mxu0 0
    %332 = vmatpush2.bf16.msra.mxu0 0
    %333 = vmatprep.subr.bf16.mxu0 0
    %334 = vmatpush2.bf16.msra.mxu0 0
    %335 = vmatprep.subr.bf16.mxu0 0
    %336 = vmatpush2.bf16.msra.mxu0 0
    %337 = vmatprep.subr.bf16.mxu0 0
    %338 = vmatpush2.bf16.msra.mxu0 0
    %339 = vmatprep.mubr.bf16.mxu0 0
    %340 = vmatmul.mubr.bf16.gmra.mxu0 %v302
    %v341 = vpop.f32.mrf.mxu0
    %v342 = vadd.f32 0.0, %v341
    %v343 = vpop.f32.mrf.mxu0
    %v344 = vpop.f32.mrf.mxu0
    %v345 = vpop.f32.mrf.mxu0
    %346 = vdwg.mxu0
    %v347 = vmul.f32 %v279, 0.0
    %v348 = vadd.f32 %v347, %v342
    %v349 = vld [vmem:[%s5] sm:$0xff]
    %v350 = vld [vmem:[%s5 + $0x8] sm:$0xff]
    %351 = vset.pattern.permute.xlu0 0
    %352 = vperm.xlu0 %351, %v349
    %v353 = vpop.permute.xlu0 %352
    %354 = vset.pattern.permute.xlu0 0
    %355 = vperm.xlu0 %354, %v350
    %v356 = vpop.permute.xlu0 %355
    %vm357 = vcmp.eq.s32.totalorder %v68, %v353
    %vm358 = vcmp.eq.s32.totalorder %v68, %v356
    %v359 = vsel %vm357, 1, 0
    %v360 = vsel %vm358, 1, 0
    %v361 = vcvt.s32.f32 %v359
    %v362 = vcvt.s32.f32 %v360
    %v363 = vpack.c.bf16 %v362, %v361
    %v365 = vsel %vm76, %v363, 0
    %367 = vmatprep.subr.bf16.mxu0 0
    %368 = vmatpush1.bf16.msra.mxu0 0
    %369 = vmatprep.subr.bf16.mxu0 0
    %370 = vmatpush1.bf16.msra.mxu0 0
    %371 = vmatprep.subr.bf16.mxu0 0
    %372 = vmatpush1.bf16.msra.mxu0 0
    %373 = vmatprep.subr.bf16.mxu0 0
    %374 = vmatpush1.bf16.msra.mxu0 0
    %375 = vmatprep.subr.bf16.mxu0 0
    %376 = vmatpush1.bf16.msra.mxu0 0
    %377 = vmatprep.subr.bf16.mxu0 0
    %378 = vmatpush1.bf16.msra.mxu0 0
    %379 = vmatprep.subr.bf16.mxu0 0
    %380 = vmatpush1.bf16.msra.mxu0 0
    %381 = vmatprep.subr.bf16.mxu0 0
    %382 = vmatpush1.bf16.msra.mxu0 %v82
    %383 = vmatprep.subr.bf16.mxu0 0
    %384 = vmatpush2.bf16.msra.mxu0 0
    %385 = vmatprep.subr.bf16.mxu0 0
    %386 = vmatpush2.bf16.msra.mxu0 0
    %387 = vmatprep.subr.bf16.mxu0 0
    %388 = vmatpush2.bf16.msra.mxu0 0
    %389 = vmatprep.subr.bf16.mxu0 0
    %390 = vmatpush2.bf16.msra.mxu0 0
    %391 = vmatprep.subr.bf16.mxu0 0
    %392 = vmatpush2.bf16.msra.mxu0 0
    %393 = vmatprep.subr.bf16.mxu0 0
    %394 = vmatpush2.bf16.msra.mxu0 0
    %395 = vmatprep.subr.bf16.mxu0 0
    %396 = vmatpush2.bf16.msra.mxu0 0
    %397 = vmatprep.subr.bf16.mxu0 0
    %398 = vmatpush2.bf16.msra.mxu0 0
    %399 = vmatprep.mubr.bf16.mxu0 0
    %400 = vmatmul.mubr.bf16.gmra.mxu0 %v365
    %v401 = vpop.f32.mrf.mxu0
    %v402 = vadd.f32 0.0, %v401
    %v403 = vpop.f32.mrf.mxu0
    %v404 = vpop.f32.mrf.mxu0
    %v405 = vadd.f32 0.0, %v404
    %v406 = vpop.f32.mrf.mxu0
    %407 = vdwg.mxu0
    %v408 = vld [vmem:[%s7] sm:$0xf]
    %v409 = vld [vmem:[%s7 + $0x4] sm:$0xf]
    %v410 = vld [vmem:[%s7 + $0x8] sm:$0xf]
    %v411 = vld [vmem:[%s7 + $0xc] sm:$0xf]
    %v412 = vpack.c.bf16 %v402, %v402
    %v413 = vld [vmem:[%s10] sm:$0xf]
    %v414 = vld [vmem:[%s10 + $0x4] sm:$0xf]
    %v415 = vld [vmem:[%s10 + $0x8] sm:$0xf]
    %v416 = vld [vmem:[%s10 + $0xc] sm:$0xf]
    %v417 = vpack.c.bf16 %v405, %v405
    %v422 = vunpack.c.l.b16 %v413
    %v423 = vunpack.c.l.b16 %v414
    %v424 = vunpack.c.l.b16 %v415
    %v425 = vunpack.c.l.b16 %v416
    %v426 = vpack.c.b16 %v423, %v422
    %v427 = vpack.c.b16 %v425, %v424
    %v431 = vsel %vm148, %v417, 0
    %433 = vmatprep.subr.bf16.mxu0 0
    %434 = vmatpush1.bf16.msra.mxu0 0
    %435 = vmatprep.subr.bf16.mxu0 0
    %436 = vmatpush1.bf16.msra.mxu0 0
    %437 = vmatprep.subr.bf16.mxu0 0
    %438 = vmatpush1.bf16.msra.mxu0 0
    %439 = vmatprep.subr.bf16.mxu0 0
    %440 = vmatpush1.bf16.msra.mxu0 0
    %441 = vmatprep.subr.bf16.mxu0 0
    %442 = vmatpush1.bf16.msra.mxu0 0
    %443 = vmatprep.subr.bf16.mxu0 0
    %444 = vmatpush1.bf16.msra.mxu0 0
    %445 = vmatprep.subr.bf16.mxu0 0
    %446 = vmatpush1.bf16.msra.mxu0 %v427
    %447 = vmatprep.subr.bf16.mxu0 0
    %448 = vmatpush1.bf16.msra.mxu0 %v426
    %449 = vmatprep.subr.bf16.mxu0 0
    %450 = vmatpush2.bf16.msra.mxu0 0
    %451 = vmatprep.subr.bf16.mxu0 0
    %452 = vmatpush2.bf16.msra.mxu0 0
    %453 = vmatprep.subr.bf16.mxu0 0
    %454 = vmatpush2.bf16.msra.mxu0 0
    %455 = vmatprep.subr.bf16.mxu0 0
    %456 = vmatpush2.bf16.msra.mxu0 0
    %457 = vmatprep.subr.bf16.mxu0 0
    %458 = vmatpush2.bf16.msra.mxu0 0
    %459 = vmatprep.subr.bf16.mxu0 0
    %460 = vmatpush2.bf16.msra.mxu0 0
    %461 = vmatprep.subr.bf16.mxu0 0
    %462 = vmatpush2.bf16.msra.mxu0 0
    %463 = vmatprep.subr.bf16.mxu0 0
    %464 = vmatpush2.bf16.msra.mxu0 0
    %465 = vmatprep.mubr.bf16.mxu0 0
    %466 = vmatmul.mubr.bf16.gmra.mxu0 %v431
    %v467 = vpop.f32.mrf.mxu0
    %v468 = vadd.f32 0.0, %v467
    %v469 = vpop.f32.mrf.mxu0
    %v470 = vpop.f32.mrf.mxu0
    %v471 = vpop.f32.mrf.mxu0
    %472 = vdwg.mxu0
    %v477 = vunpack.c.l.b16 %v408
    %v478 = vunpack.c.l.b16 %v409
    %v479 = vunpack.c.l.b16 %v410
    %v480 = vunpack.c.l.b16 %v411
    %v481 = vpack.c.b16 %v478, %v477
    %v482 = vpack.c.b16 %v480, %v479
    %v486 = vsel %vm148, %v412, 0
    %488 = vmatprep.subr.bf16.mxu0 0
    %489 = vmatpush1.bf16.msra.mxu0 0
    %490 = vmatprep.subr.bf16.mxu0 0
    %491 = vmatpush1.bf16.msra.mxu0 0
    %492 = vmatprep.subr.bf16.mxu0 0
    %493 = vmatpush1.bf16.msra.mxu0 0
    %494 = vmatprep.subr.bf16.mxu0 0
    %495 = vmatpush1.bf16.msra.mxu0 0
    %496 = vmatprep.subr.bf16.mxu0 0
    %497 = vmatpush1.bf16.msra.mxu0 0
    %498 = vmatprep.subr.bf16.mxu0 0
    %499 = vmatpush1.bf16.msra.mxu0 0
    %500 = vmatprep.subr.bf16.mxu0 0
    %501 = vmatpush1.bf16.msra.mxu0 %v482
    %502 = vmatprep.subr.bf16.mxu0 0
    %503 = vmatpush1.bf16.msra.mxu0 %v481
    %504 = vmatprep.subr.bf16.mxu0 0
    %505 = vmatpush2.bf16.msra.mxu0 0
    %506 = vmatprep.subr.bf16.mxu0 0
    %507 = vmatpush2.bf16.msra.mxu0 0
    %508 = vmatprep.subr.bf16.mxu0 0
    %509 = vmatpush2.bf16.msra.mxu0 0
    %510 = vmatprep.subr.bf16.mxu0 0
    %511 = vmatpush2.bf16.msra.mxu0 0
    %512 = vmatprep.subr.bf16.mxu0 0
    %513 = vmatpush2.bf16.msra.mxu0 0
    %514 = vmatprep.subr.bf16.mxu0 0
    %515 = vmatpush2.bf16.msra.mxu0 0
    %516 = vmatprep.subr.bf16.mxu0 0
    %517 = vmatpush2.bf16.msra.mxu0 0
    %518 = vmatprep.subr.bf16.mxu0 0
    %519 = vmatpush2.bf16.msra.mxu0 0
    %520 = vmatprep.mubr.bf16.mxu0 0
    %521 = vmatmul.mubr.bf16.gmra.mxu0 %v486
    %v522 = vpop.f32.mrf.mxu0
    %v523 = vadd.f32 %v468, %v522
    %v524 = vpop.f32.mrf.mxu0
    %v525 = vpop.f32.mrf.mxu0
    %v526 = vpop.f32.mrf.mxu0
    %527 = vdwg.mxu0
    %v528 = vld [vmem:[%s6] sm:$0x1]
    %v530 = vlaneseq
    %v531 = vshrl.u32 %v530, 7
    %v532 = vsub.s32 0, %v531
    %v533 = vrot.slane %v528, %v532
    %v535 = vadd.f32 %v523, %v533
    %v536 = vmax.f32 %v535, 0.0
    %v537 = vpack.c.bf16 %v536, %v536
    %vm538 = vcmp.lt.s32.totalorder %v195, 3
    %v539 = vld [vmem:[%s8] sm:$0xf]
    %v540 = vld [vmem:[%s8 + $0x4] sm:$0xf]
    %v541 = vld [vmem:[%s8 + $0x8] sm:$0xf]
    %v542 = vld [vmem:[%s8 + $0xc] sm:$0xf]
    %v543 = vld [vmem:[%s8 + $0x10] sm:$0xf]
    %v544 = vld [vmem:[%s8 + $0x14] sm:$0xf]
    %v545 = vld [vmem:[%s8 + $0x18] sm:$0xf]
    %v546 = vld [vmem:[%s8 + $0x1c] sm:$0xf]
    %v547 = vld [vmem:[%s9] sm:$0x1]
    %v549 = vlaneseq
    %v550 = vshrl.u32 %v549, 7
    %v551 = vsub.s32 0, %v550
    %v552 = vrot.slane %v547, %v551
    %v562 = vunpack.c.l.b16 %v539
    %v563 = vunpack.c.l.b16 %v540
    %v564 = vunpack.c.l.b16 %v541
    %v565 = vunpack.c.l.b16 %v542
    %v566 = vunpack.c.l.b16 %v543
    %v567 = vunpack.c.l.b16 %v544
    %v568 = vunpack.c.l.b16 %v545
    %v569 = vunpack.c.l.b16 %v546
    %v570 = vpack.c.b16 %v563, %v562
    %v571 = vpack.c.b16 %v565, %v564
    %v572 = vpack.c.b16 %v567, %v566
    %v573 = vpack.c.b16 %v569, %v568
    %vm578 = vcmask 523264
    %v580 = vsel %vm578, %v537, 0
    %582 = vmatprep.subr.bf16.mxu0 0
    %583 = vmatpush1.bf16.msra.mxu0 0
    %584 = vmatprep.subr.bf16.mxu0 0
    %585 = vmatpush1.bf16.msra.mxu0 0
    %586 = vmatprep.subr.bf16.mxu0 0
    %587 = vmatpush1.bf16.msra.mxu0 0
    %588 = vmatprep.subr.bf16.mxu0 0
    %589 = vmatpush1.bf16.msra.mxu0 0
    %590 = vmatprep.subr.bf16.mxu0 0
    %591 = vmatpush1.bf16.msra.mxu0 %v573
    %592 = vmatprep.subr.bf16.mxu0 0
    %593 = vmatpush1.bf16.msra.mxu0 %v572
    %594 = vmatprep.subr.bf16.mxu0 0
    %595 = vmatpush1.bf16.msra.mxu0 %v571
    %596 = vmatprep.subr.bf16.mxu0 0
    %597 = vmatpush1.bf16.msra.mxu0 %v570
    %598 = vmatprep.subr.bf16.mxu0 0
    %599 = vmatpush2.bf16.msra.mxu0 0
    %600 = vmatprep.subr.bf16.mxu0 0
    %601 = vmatpush2.bf16.msra.mxu0 0
    %602 = vmatprep.subr.bf16.mxu0 0
    %603 = vmatpush2.bf16.msra.mxu0 0
    %604 = vmatprep.subr.bf16.mxu0 0
    %605 = vmatpush2.bf16.msra.mxu0 0
    %606 = vmatprep.subr.bf16.mxu0 0
    %607 = vmatpush2.bf16.msra.mxu0 0
    %608 = vmatprep.subr.bf16.mxu0 0
    %609 = vmatpush2.bf16.msra.mxu0 0
    %610 = vmatprep.subr.bf16.mxu0 0
    %611 = vmatpush2.bf16.msra.mxu0 0
    %612 = vmatprep.subr.bf16.mxu0 0
    %613 = vmatpush2.bf16.msra.mxu0 0
    %614 = vmatprep.mubr.bf16.mxu0 0
    %615 = vmatmul.mubr.bf16.gmra.mxu0 %v580
    %v616 = vpop.f32.mrf.mxu0
    %v617 = vadd.f32 %v552, %v616
    %v618 = vpop.f32.mrf.mxu0
    %v619 = vpop.f32.mrf.mxu0
    %v620 = vpop.f32.mrf.mxu0
    %621 = vdwg.mxu0
    %v622 = vsel %vm538, 1, 0
    %vm623 = vcmp.eq.s32.totalorder %v622, 1
    %v624 = vsel %vm623, %v617, -1e+30
    %v625 = vld [vmem:[%s11] sm:$0xf]
    %v626 = vld [vmem:[%s11 + $0x4] sm:$0xf]
    %v627 = vld [vmem:[%s11 + $0x8] sm:$0xf]
    %v628 = vld [vmem:[%s11 + $0xc] sm:$0xf]
    %v629 = vld [vmem:[%s11 + $0x10] sm:$0xf]
    %v630 = vld [vmem:[%s11 + $0x14] sm:$0xf]
    %v631 = vld [vmem:[%s11 + $0x18] sm:$0xf]
    %v632 = vld [vmem:[%s11 + $0x1c] sm:$0xf]
    %v633 = vld [vmem:[%s12] sm:$0x1]
    %v635 = vlaneseq
    %v636 = vshrl.u32 %v635, 7
    %v637 = vsub.s32 0, %v636
    %v638 = vrot.slane %v633, %v637
    %v648 = vunpack.c.l.b16 %v625
    %v649 = vunpack.c.l.b16 %v626
    %v650 = vunpack.c.l.b16 %v627
    %v651 = vunpack.c.l.b16 %v628
    %v652 = vunpack.c.l.b16 %v629
    %v653 = vunpack.c.l.b16 %v630
    %v654 = vunpack.c.l.b16 %v631
    %v655 = vunpack.c.l.b16 %v632
    %v656 = vpack.c.b16 %v649, %v648
    %v657 = vpack.c.b16 %v651, %v650
    %v658 = vpack.c.b16 %v653, %v652
    %v659 = vpack.c.b16 %v655, %v654
    %664 = vmatprep.subr.bf16.mxu0 0
    %665 = vmatpush1.bf16.msra.mxu0 0
    %666 = vmatprep.subr.bf16.mxu0 0
    %667 = vmatpush1.bf16.msra.mxu0 0
    %668 = vmatprep.subr.bf16.mxu0 0
    %669 = vmatpush1.bf16.msra.mxu0 0
    %670 = vmatprep.subr.bf16.mxu0 0
    %671 = vmatpush1.bf16.msra.mxu0 0
    %672 = vmatprep.subr.bf16.mxu0 0
    %673 = vmatpush1.bf16.msra.mxu0 %v659
    %674 = vmatprep.subr.bf16.mxu0 0
    %675 = vmatpush1.bf16.msra.mxu0 %v658
    %676 = vmatprep.subr.bf16.mxu0 0
    %677 = vmatpush1.bf16.msra.mxu0 %v657
    %678 = vmatprep.subr.bf16.mxu0 0
    %679 = vmatpush1.bf16.msra.mxu0 %v656
    %680 = vmatprep.subr.bf16.mxu0 0
    %681 = vmatpush2.bf16.msra.mxu0 0
    %682 = vmatprep.subr.bf16.mxu0 0
    %683 = vmatpush2.bf16.msra.mxu0 0
    %684 = vmatprep.subr.bf16.mxu0 0
    %685 = vmatpush2.bf16.msra.mxu0 0
    %686 = vmatprep.subr.bf16.mxu0 0
    %687 = vmatpush2.bf16.msra.mxu0 0
    %688 = vmatprep.subr.bf16.mxu0 0
    %689 = vmatpush2.bf16.msra.mxu0 0
    %690 = vmatprep.subr.bf16.mxu0 0
    %691 = vmatpush2.bf16.msra.mxu0 0
    %692 = vmatprep.subr.bf16.mxu0 0
    %693 = vmatpush2.bf16.msra.mxu0 0
    %694 = vmatprep.subr.bf16.mxu0 0
    %695 = vmatpush2.bf16.msra.mxu0 0
    %696 = vmatprep.mubr.bf16.mxu0 0
    %697 = vmatmul.mubr.bf16.gmra.mxu0 %v580
    %v698 = vpop.f32.mrf.mxu0
    %v699 = vadd.f32 %v638, %v698
    %v700 = vpop.f32.mrf.mxu0
    %v701 = vpop.f32.mrf.mxu0
    %v702 = vpop.f32.mrf.mxu0
    %703 = vdwg.mxu0
    %v704 = vsel %vm623, %v699, -1e+30
    %v705 = vsel %vm148, %v624, -inf
    %706 = vmax.xlane.f32.xlu0 %v705
    %v707 = vpop.xlane.xlu0 %706
    %v708 = vsel %vm148, %v704, -inf
    %709 = vmax.xlane.f32.xlu0 %v708
    %v710 = vpop.xlane.xlu0 %709
    %v711 = vmax.f32 %v707, %v710
    %v712 = vrot.slane %v711, 4
    %v713 = vmax.f32 %v711, %v712
    %v714 = vrot.slane %v713, 2
    %v715 = vmax.f32 %v713, %v714
    %v716 = vrot.slane %v715, 1
    %v717 = vmax.f32 %v715, %v716
    %v718 = vmax.f32 %v275, %v717
    %v719 = vsub.f32 %v275, %v718
    %v720 = vmul.f32 %v719, 8.0
    %v721 = vmul.f32 %v720, 1.442695
    %v722 = vpow.pop %v721
    %v723 = vsub.f32 %v624, %v718
    %v724 = vsub.f32 %v704, %v718
    %v725 = vmul.f32 %v723, 8.0
    %v726 = vmul.f32 %v724, 8.0
    %v727 = vmul.f32 %v725, 1.442695
    %v728 = vpow.pop %v727
    %v729 = vmul.f32 %v726, 1.442695
    %v730 = vpow.pop %v729
    %v731 = vpack.c.bf16 %v730, %v728
    %732 = vxpose.xlu0.c.b16.start [1/8] %v363, 128
    %733 = vxpose.xlu0.c.b16.cont [2/8] 0, 128
    %734 = vxpose.xlu0.c.b16.cont [3/8] 0, 128
    %735 = vxpose.xlu0.c.b16.cont [4/8] 0, 128
    %736 = vxpose.xlu0.c.b16.cont [5/8] 0, 128
    %737 = vxpose.xlu0.c.b16.cont [6/8] 0, 128
    %738 = vxpose.xlu0.c.b16.cont [7/8] 0, 128
    %739 = vxpose.xlu0.c.b16.end [8/8] 0, 128
    %v740 = vpop.trf.xlu0
    %v741 = vpop.trf.xlu0
    %v742 = vpop.trf.xlu0
    %v743 = vpop.trf.xlu0
    %v744 = vpop.trf.xlu0
    %v745 = vpop.trf.xlu0
    %v746 = vpop.trf.xlu0
    %v747 = vpop.trf.xlu0
    %vm748 = vcmask 130048
    %v750 = vsel %vm748, %v740, 0
    %752 = vmatprep.subr.bf16.mxu0 0
    %753 = vmatpush1.bf16.msra.mxu0 0
    %754 = vmatprep.subr.bf16.mxu0 0
    %755 = vmatpush1.bf16.msra.mxu0 0
    %756 = vmatprep.subr.bf16.mxu0 0
    %757 = vmatpush1.bf16.msra.mxu0 0
    %758 = vmatprep.subr.bf16.mxu0 0
    %759 = vmatpush1.bf16.msra.mxu0 0
    %760 = vmatprep.subr.bf16.mxu0 0
    %761 = vmatpush1.bf16.msra.mxu0 0
    %762 = vmatprep.subr.bf16.mxu0 0
    %763 = vmatpush1.bf16.msra.mxu0 0
    %764 = vmatprep.subr.bf16.mxu0 0
    %765 = vmatpush1.bf16.msra.mxu0 0
    %766 = vmatprep.subr.bf16.mxu0 0
    %767 = vmatpush1.bf16.msra.mxu0 %v731
    %768 = vmatprep.subr.bf16.mxu0 0
    %769 = vmatpush2.bf16.msra.mxu0 0
    %770 = vmatprep.subr.bf16.mxu0 0
    %771 = vmatpush2.bf16.msra.mxu0 0
    %772 = vmatprep.subr.bf16.mxu0 0
    %773 = vmatpush2.bf16.msra.mxu0 0
    %774 = vmatprep.subr.bf16.mxu0 0
    %775 = vmatpush2.bf16.msra.mxu0 0
    %776 = vmatprep.subr.bf16.mxu0 0
    %777 = vmatpush2.bf16.msra.mxu0 0
    %778 = vmatprep.subr.bf16.mxu0 0
    %779 = vmatpush2.bf16.msra.mxu0 0
    %780 = vmatprep.subr.bf16.mxu0 0
    %781 = vmatpush2.bf16.msra.mxu0 0
    %782 = vmatprep.subr.bf16.mxu0 0
    %783 = vmatpush2.bf16.msra.mxu0 0
    %784 = vmatprep.mubr.bf16.mxu0 0
    %785 = vmatmul.mubr.bf16.gmra.mxu0 %v750
    %v786 = vpop.f32.mrf.mxu0
    %v787 = vadd.f32 0.0, %v786
    %v788 = vpop.f32.mrf.mxu0
    %v789 = vpop.f32.mrf.mxu0
    %v790 = vpop.f32.mrf.mxu0
    %791 = vdwg.mxu0
    %v792 = vmul.f32 %v348, %v722
    %v793 = vadd.f32 %v792, %v787
    %v794 = vadd.f32 %v793, 1e-16
    %v795 = vlog2.pop %v794
    %v796 = vmul.f32 %v795, 0.6931472
    %v797 = vmul.f32 %v796, 0.125
    %v798 = vadd.f32 %v797, %v718
    %v799 = vpack.c.bf16 %v798, %v798
    %v800 = vld [vmem:[%s13] sm:$0xf]
    %v801 = vld [vmem:[%s13 + $0x4] sm:$0xf]
    %v802 = vld [vmem:[%s13 + $0x8] sm:$0xf]
    %v803 = vld [vmem:[%s13 + $0xc] sm:$0xf]
    %v804 = vld [vmem:[%s14] sm:$0xf]
    %v805 = vld [vmem:[%s14 + $0x4] sm:$0xf]
    %v806 = vld [vmem:[%s14 + $0x8] sm:$0xf]
    %v807 = vld [vmem:[%s14 + $0xc] sm:$0xf]
    %v812 = vunpack.c.l.b16 %v804
    %v813 = vunpack.c.l.b16 %v805
    %v814 = vunpack.c.l.b16 %v806
    %v815 = vunpack.c.l.b16 %v807
    %v816 = vpack.c.b16 %v813, %v812
    %v817 = vpack.c.b16 %v815, %v814
    %v820 = vsel %vm148, %v65, 0
    %822 = vmatprep.subr.bf16.mxu0 0
    %823 = vmatpush1.bf16.msra.mxu0 0
    %824 = vmatprep.subr.bf16.mxu0 0
    %825 = vmatpush1.bf16.msra.mxu0 0
    %826 = vmatprep.subr.bf16.mxu0 0
    %827 = vmatpush1.bf16.msra.mxu0 0
    %828 = vmatprep.subr.bf16.mxu0 0
    %829 = vmatpush1.bf16.msra.mxu0 0
    %830 = vmatprep.subr.bf16.mxu0 0
    %831 = vmatpush1.bf16.msra.mxu0 0
    %832 = vmatprep.subr.bf16.mxu0 0
    %833 = vmatpush1.bf16.msra.mxu0 0
    %834 = vmatprep.subr.bf16.mxu0 0
    %835 = vmatpush1.bf16.msra.mxu0 %v817
    %836 = vmatprep.subr.bf16.mxu0 0
    %837 = vmatpush1.bf16.msra.mxu0 %v816
    %838 = vmatprep.subr.bf16.mxu0 0
    %839 = vmatpush2.bf16.msra.mxu0 0
    %840 = vmatprep.subr.bf16.mxu0 0
    %841 = vmatpush2.bf16.msra.mxu0 0
    %842 = vmatprep.subr.bf16.mxu0 0
    %843 = vmatpush2.bf16.msra.mxu0 0
    %844 = vmatprep.subr.bf16.mxu0 0
    %845 = vmatpush2.bf16.msra.mxu0 0
    %846 = vmatprep.subr.bf16.mxu0 0
    %847 = vmatpush2.bf16.msra.mxu0 0
    %848 = vmatprep.subr.bf16.mxu0 0
    %849 = vmatpush2.bf16.msra.mxu0 0
    %850 = vmatprep.subr.bf16.mxu0 0
    %851 = vmatpush2.bf16.msra.mxu0 0
    %852 = vmatprep.subr.bf16.mxu0 0
    %853 = vmatpush2.bf16.msra.mxu0 0
    %854 = vmatprep.mubr.bf16.mxu0 0
    %855 = vmatmul.mubr.bf16.gmra.mxu0 %v820
    %v856 = vpop.f32.mrf.mxu0
    %v857 = vadd.f32 0.0, %v856
    %v858 = vpop.f32.mrf.mxu0
    %v859 = vpop.f32.mrf.mxu0
    %v860 = vpop.f32.mrf.mxu0
    %861 = vdwg.mxu0
    %v866 = vunpack.c.l.b16 %v800
    %v867 = vunpack.c.l.b16 %v801
    %v868 = vunpack.c.l.b16 %v802
    %v869 = vunpack.c.l.b16 %v803
    %v870 = vpack.c.b16 %v867, %v866
    %v871 = vpack.c.b16 %v869, %v868
    %v875 = vsel %vm148, %v799, 0
    %877 = vmatprep.subr.bf16.mxu0 0
    %878 = vmatpush1.bf16.msra.mxu0 0
    %879 = vmatprep.subr.bf16.mxu0 0
    %880 = vmatpush1.bf16.msra.mxu0 0
    %881 = vmatprep.subr.bf16.mxu0 0
    %882 = vmatpush1.bf16.msra.mxu0 0
    %883 = vmatprep.subr.bf16.mxu0 0
    %884 = vmatpush1.bf16.msra.mxu0 0
    %885 = vmatprep.subr.bf16.mxu0 0
    %886 = vmatpush1.bf16.msra.mxu0 0
    %887 = vmatprep.subr.bf16.mxu0 0
    %888 = vmatpush1.bf16.msra.mxu0 0
    %889 = vmatprep.subr.bf16.mxu0 0
    %890 = vmatpush1.bf16.msra.mxu0 %v871
    %891 = vmatprep.subr.bf16.mxu0 0
    %892 = vmatpush1.bf16.msra.mxu0 %v870
    %893 = vmatprep.subr.bf16.mxu0 0
    %894 = vmatpush2.bf16.msra.mxu0 0
    %895 = vmatprep.subr.bf16.mxu0 0
    %896 = vmatpush2.bf16.msra.mxu0 0
    %897 = vmatprep.subr.bf16.mxu0 0
    %898 = vmatpush2.bf16.msra.mxu0 0
    %899 = vmatprep.subr.bf16.mxu0 0
    %900 = vmatpush2.bf16.msra.mxu0 0
    %901 = vmatprep.subr.bf16.mxu0 0
    %902 = vmatpush2.bf16.msra.mxu0 0
    %903 = vmatprep.subr.bf16.mxu0 0
    %904 = vmatpush2.bf16.msra.mxu0 0
    %905 = vmatprep.subr.bf16.mxu0 0
    %906 = vmatpush2.bf16.msra.mxu0 0
    %907 = vmatprep.subr.bf16.mxu0 0
    %908 = vmatpush2.bf16.msra.mxu0 0
    %909 = vmatprep.mubr.bf16.mxu0 0
    %910 = vmatmul.mubr.bf16.gmra.mxu0 %v875
    %v911 = vpop.f32.mrf.mxu0
    %v912 = vadd.f32 %v857, %v911
    %v913 = vpop.f32.mrf.mxu0
    %v914 = vpop.f32.mrf.mxu0
    %v915 = vpop.f32.mrf.mxu0
    %916 = vdwg.mxu0
    %v917 = vld [vmem:[%s15] sm:$0x1]
    %v919 = vlaneseq
    %v920 = vshrl.u32 %v919, 7
    %v921 = vsub.s32 0, %v920
    %v922 = vrot.slane %v917, %v921
    %v924 = vadd.f32 %v912, %v922
    %v925 = vmax.f32 %v924, 0.0
    %v926 = vpack.c.bf16 %v925, %v925
    %v927 = vld [vmem:[%s16] sm:$0xf]
    %v928 = vld [vmem:[%s16 + $0x4] sm:$0xf]
    %v929 = vld [vmem:[%s16 + $0x8] sm:$0xf]
    %v930 = vld [vmem:[%s16 + $0xc] sm:$0xf]
    %v931 = vld [vmem:[%s16 + $0x10] sm:$0xf]
    %v932 = vld [vmem:[%s16 + $0x14] sm:$0xf]
    %v933 = vld [vmem:[%s16 + $0x18] sm:$0xf]
    %v934 = vld [vmem:[%s16 + $0x1c] sm:$0xf]
    %v935 = vld [vmem:[%s17] sm:$0x1]
    %v937 = vlaneseq
    %v938 = vshrl.u32 %v937, 7
    %v939 = vsub.s32 0, %v938
    %v940 = vrot.slane %v935, %v939
    %v950 = vunpack.c.l.b16 %v927
    %v951 = vunpack.c.l.b16 %v928
    %v952 = vunpack.c.l.b16 %v929
    %v953 = vunpack.c.l.b16 %v930
    %v954 = vunpack.c.l.b16 %v931
    %v955 = vunpack.c.l.b16 %v932
    %v956 = vunpack.c.l.b16 %v933
    %v957 = vunpack.c.l.b16 %v934
    %v958 = vpack.c.b16 %v951, %v950
    %v959 = vpack.c.b16 %v953, %v952
    %v960 = vpack.c.b16 %v955, %v954
    %v961 = vpack.c.b16 %v957, %v956
    %v967 = vsel %vm578, %v926, 0
    %969 = vmatprep.subr.bf16.mxu0 0
    %970 = vmatpush1.bf16.msra.mxu0 0
    %971 = vmatprep.subr.bf16.mxu0 0
    %972 = vmatpush1.bf16.msra.mxu0 0
    %973 = vmatprep.subr.bf16.mxu0 0
    %974 = vmatpush1.bf16.msra.mxu0 0
    %975 = vmatprep.subr.bf16.mxu0 0
    %976 = vmatpush1.bf16.msra.mxu0 0
    %977 = vmatprep.subr.bf16.mxu0 0
    %978 = vmatpush1.bf16.msra.mxu0 %v961
    %979 = vmatprep.subr.bf16.mxu0 0
    %980 = vmatpush1.bf16.msra.mxu0 %v960
    %981 = vmatprep.subr.bf16.mxu0 0
    %982 = vmatpush1.bf16.msra.mxu0 %v959
    %983 = vmatprep.subr.bf16.mxu0 0
    %984 = vmatpush1.bf16.msra.mxu0 %v958
    %985 = vmatprep.subr.bf16.mxu0 0
    %986 = vmatpush2.bf16.msra.mxu0 0
    %987 = vmatprep.subr.bf16.mxu0 0
    %988 = vmatpush2.bf16.msra.mxu0 0
    %989 = vmatprep.subr.bf16.mxu0 0
    %990 = vmatpush2.bf16.msra.mxu0 0
    %991 = vmatprep.subr.bf16.mxu0 0
    %992 = vmatpush2.bf16.msra.mxu0 0
    %993 = vmatprep.subr.bf16.mxu0 0
    %994 = vmatpush2.bf16.msra.mxu0 0
    %995 = vmatprep.subr.bf16.mxu0 0
    %996 = vmatpush2.bf16.msra.mxu0 0
    %997 = vmatprep.subr.bf16.mxu0 0
    %998 = vmatpush2.bf16.msra.mxu0 0
    %999 = vmatprep.subr.bf16.mxu0 0
    %1000 = vmatpush2.bf16.msra.mxu0 0
    %1001 = vmatprep.mubr.bf16.mxu0 0
    %1002 = vmatmul.mubr.bf16.gmra.mxu0 %v967
    %v1003 = vpop.f32.mrf.mxu0
    %v1004 = vadd.f32 %v940, %v1003
    %v1005 = vpop.f32.mrf.mxu0
    %v1006 = vpop.f32.mrf.mxu0
    %v1007 = vpop.f32.mrf.mxu0
    %1008 = vdwg.mxu0
    %v1009 = vpack.c.bf16 %v1004, %v1004
    %v1011 = vsel %vm80, %v1009, 0
    %1013 = vmatprep.subr.bf16.mxu0 0
    %1014 = vmatpush1.bf16.msra.mxu0 0
    %1015 = vmatprep.subr.bf16.mxu0 0
    %1016 = vmatpush1.bf16.msra.mxu0 0
    %1017 = vmatprep.subr.bf16.mxu0 0
    %1018 = vmatpush1.bf16.msra.mxu0 0
    %1019 = vmatprep.subr.bf16.mxu0 0
    %1020 = vmatpush1.bf16.msra.mxu0 0
    %1021 = vmatprep.subr.bf16.mxu0 0
    %1022 = vmatpush1.bf16.msra.mxu0 0
    %1023 = vmatprep.subr.bf16.mxu0 0
    %1024 = vmatpush1.bf16.msra.mxu0 0
    %1025 = vmatprep.subr.bf16.mxu0 0
    %1026 = vmatpush1.bf16.msra.mxu0 0
    %1027 = vmatprep.subr.bf16.mxu0 0
    %1028 = vmatpush1.bf16.msra.mxu0 %v1011
    %1029 = vmatprep.subr.bf16.mxu0 0
    %1030 = vmatpush2.bf16.msra.mxu0 0
    %1031 = vmatprep.subr.bf16.mxu0 0
    %1032 = vmatpush2.bf16.msra.mxu0 0
    %1033 = vmatprep.subr.bf16.mxu0 0
    %1034 = vmatpush2.bf16.msra.mxu0 0
    %1035 = vmatprep.subr.bf16.mxu0 0
    %1036 = vmatpush2.bf16.msra.mxu0 0
    %1037 = vmatprep.subr.bf16.mxu0 0
    %1038 = vmatpush2.bf16.msra.mxu0 0
    %1039 = vmatprep.subr.bf16.mxu0 0
    %1040 = vmatpush2.bf16.msra.mxu0 0
    %1041 = vmatprep.subr.bf16.mxu0 0
    %1042 = vmatpush2.bf16.msra.mxu0 0
    %1043 = vmatprep.subr.bf16.mxu0 0
    %1044 = vmatpush2.bf16.msra.mxu0 0
    %1045 = vmatprep.mubr.bf16.mxu0 0
    %1046 = vmatmul.mubr.bf16.gmra.mxu0 %v78
    %v1047 = vpop.f32.mrf.mxu0
    %v1048 = vadd.f32 0.0, %v1047
    %v1049 = vpop.f32.mrf.mxu0
    %v1050 = vpop.f32.mrf.mxu0
    %v1051 = vpop.f32.mrf.mxu0
    %1052 = vdwg.mxu0
    %v1053 = vpack.c.bf16 %v1048, %v1048
    %v1055 = vsel %vm148, %v1053, 0
    %1057 = vmatprep.subr.bf16.mxu0 0
    %1058 = vmatpush1.bf16.msra.mxu0 0
    %1059 = vmatprep.subr.bf16.mxu0 0
    %1060 = vmatpush1.bf16.msra.mxu0 0
    %1061 = vmatprep.subr.bf16.mxu0 0
    %1062 = vmatpush1.bf16.msra.mxu0 0
    %1063 = vmatprep.subr.bf16.mxu0 0
    %1064 = vmatpush1.bf16.msra.mxu0 0
    %1065 = vmatprep.subr.bf16.mxu0 0
    %1066 = vmatpush1.bf16.msra.mxu0 0
    %1067 = vmatprep.subr.bf16.mxu0 0
    %1068 = vmatpush1.bf16.msra.mxu0 0
    %1069 = vmatprep.subr.bf16.mxu0 0
    %1070 = vmatpush1.bf16.msra.mxu0 %v145
    %1071 = vmatprep.subr.bf16.mxu0 0
    %1072 = vmatpush1.bf16.msra.mxu0 %v144
    %1073 = vmatprep.subr.bf16.mxu0 0
    %1074 = vmatpush2.bf16.msra.mxu0 0
    %1075 = vmatprep.subr.bf16.mxu0 0
    %1076 = vmatpush2.bf16.msra.mxu0 0
    %1077 = vmatprep.subr.bf16.mxu0 0
    %1078 = vmatpush2.bf16.msra.mxu0 0
    %1079 = vmatprep.subr.bf16.mxu0 0
    %1080 = vmatpush2.bf16.msra.mxu0 0
    %1081 = vmatprep.subr.bf16.mxu0 0
    %1082 = vmatpush2.bf16.msra.mxu0 0
    %1083 = vmatprep.subr.bf16.mxu0 0
    %1084 = vmatpush2.bf16.msra.mxu0 0
    %1085 = vmatprep.subr.bf16.mxu0 0
    %1086 = vmatpush2.bf16.msra.mxu0 0
    %1087 = vmatprep.subr.bf16.mxu0 0
    %1088 = vmatpush2.bf16.msra.mxu0 0
    %1089 = vmatprep.mubr.bf16.mxu0 0
    %1090 = vmatmul.mubr.bf16.gmra.mxu0 %v1055
    %v1091 = vpop.f32.mrf.mxu0
    %v1092 = vadd.f32 %v134, %v1091
    %v1093 = vpop.f32.mrf.mxu0
    %v1094 = vpop.f32.mrf.mxu0
    %v1095 = vpop.f32.mrf.mxu0
    %1096 = vdwg.mxu0
    %v1097 = vmax.f32 %v1092, 0.0
    %v1098 = vpack.c.bf16 %v1097, %v1097
    %v1100 = vsel %vm148, %v1098, 0
    %1102 = vmatprep.subr.bf16.mxu0 0
    %1103 = vmatpush1.bf16.msra.mxu0 0
    %1104 = vmatprep.subr.bf16.mxu0 0
    %1105 = vmatpush1.bf16.msra.mxu0 0
    %1106 = vmatprep.subr.bf16.mxu0 0
    %1107 = vmatpush1.bf16.msra.mxu0 0
    %1108 = vmatprep.subr.bf16.mxu0 0
    %1109 = vmatpush1.bf16.msra.mxu0 0
    %1110 = vmatprep.subr.bf16.mxu0 0
    %1111 = vmatpush1.bf16.msra.mxu0 0
    %1112 = vmatprep.subr.bf16.mxu0 0
    %1113 = vmatpush1.bf16.msra.mxu0 0
    %1114 = vmatprep.subr.bf16.mxu0 0
    %1115 = vmatpush1.bf16.msra.mxu0 %v217
    %1116 = vmatprep.subr.bf16.mxu0 0
    %1117 = vmatpush1.bf16.msra.mxu0 %v216
    %1118 = vmatprep.subr.bf16.mxu0 0
    %1119 = vmatpush2.bf16.msra.mxu0 0
    %1120 = vmatprep.subr.bf16.mxu0 0
    %1121 = vmatpush2.bf16.msra.mxu0 0
    %1122 = vmatprep.subr.bf16.mxu0 0
    %1123 = vmatpush2.bf16.msra.mxu0 0
    %1124 = vmatprep.subr.bf16.mxu0 0
    %1125 = vmatpush2.bf16.msra.mxu0 0
    %1126 = vmatprep.subr.bf16.mxu0 0
    %1127 = vmatpush2.bf16.msra.mxu0 0
    %1128 = vmatprep.subr.bf16.mxu0 0
    %1129 = vmatpush2.bf16.msra.mxu0 0
    %1130 = vmatprep.subr.bf16.mxu0 0
    %1131 = vmatpush2.bf16.msra.mxu0 0
    %1132 = vmatprep.subr.bf16.mxu0 0
    %1133 = vmatpush2.bf16.msra.mxu0 0
    %1134 = vmatprep.mubr.bf16.mxu0 0
    %1135 = vmatmul.mubr.bf16.gmra.mxu0 %v1100
    %v1136 = vpop.f32.mrf.mxu0
    %v1137 = vadd.f32 %v206, %v1136
    %v1138 = vpop.f32.mrf.mxu0
    %v1139 = vpop.f32.mrf.mxu0
    %v1140 = vpop.f32.mrf.mxu0
    %1141 = vdwg.mxu0
    %v1142 = vsel %vm264, %v1137, -1e+30
    %v1143 = vsel %vm148, %v1142, -inf
    %1144 = vmax.xlane.f32.xlu0 %v1143
    %v1145 = vpop.xlane.xlu0 %1144
    %v1146 = vrot.slane %v1145, 4
    %v1147 = vmax.f32 %v1145, %v1146
    %v1148 = vrot.slane %v1147, 2
    %v1149 = vmax.f32 %v1147, %v1148
    %v1150 = vrot.slane %v1149, 1
    %v1151 = vmax.f32 %v1149, %v1150
    %v1152 = vmax.f32 %v1151, -1e+30
    %v1153 = vsub.f32 -1e+30, %v1152
    %v1154 = vmul.f32 %v1153, 8.0
    %v1155 = vmul.f32 %v1154, 1.442695
    %v1156 = vpow.pop %v1155
    %v1157 = vsub.f32 %v1142, %v1152
    %v1158 = vmul.f32 %v1157, 8.0
    %v1159 = vmul.f32 %v1158, 1.442695
    %v1160 = vpow.pop %v1159
    %v1161 = vpack.c.bf16 %v1160, %v1160
    %v1163 = vsel %vm80, %v1161, 0
    %1165 = vmatprep.subr.bf16.mxu0 0
    %1166 = vmatpush1.bf16.msra.mxu0 0
    %1167 = vmatprep.subr.bf16.mxu0 0
    %1168 = vmatpush1.bf16.msra.mxu0 0
    %1169 = vmatprep.subr.bf16.mxu0 0
    %1170 = vmatpush1.bf16.msra.mxu0 0
    %1171 = vmatprep.subr.bf16.mxu0 0
    %1172 = vmatpush1.bf16.msra.mxu0 0
    %1173 = vmatprep.subr.bf16.mxu0 0
    %1174 = vmatpush1.bf16.msra.mxu0 0
    %1175 = vmatprep.subr.bf16.mxu0 0
    %1176 = vmatpush1.bf16.msra.mxu0 0
    %1177 = vmatprep.subr.bf16.mxu0 0
    %1178 = vmatpush1.bf16.msra.mxu0 0
    %1179 = vmatprep.subr.bf16.mxu0 0
    %1180 = vmatpush1.bf16.msra.mxu0 %v1163
    %1181 = vmatprep.subr.bf16.mxu0 0
    %1182 = vmatpush2.bf16.msra.mxu0 0
    %1183 = vmatprep.subr.bf16.mxu0 0
    %1184 = vmatpush2.bf16.msra.mxu0 0
    %1185 = vmatprep.subr.bf16.mxu0 0
    %1186 = vmatpush2.bf16.msra.mxu0 0
    %1187 = vmatprep.subr.bf16.mxu0 0
    %1188 = vmatpush2.bf16.msra.mxu0 0
    %1189 = vmatprep.subr.bf16.mxu0 0
    %1190 = vmatpush2.bf16.msra.mxu0 0
    %1191 = vmatprep.subr.bf16.mxu0 0
    %1192 = vmatpush2.bf16.msra.mxu0 0
    %1193 = vmatprep.subr.bf16.mxu0 0
    %1194 = vmatpush2.bf16.msra.mxu0 0
    %1195 = vmatprep.subr.bf16.mxu0 0
    %1196 = vmatpush2.bf16.msra.mxu0 0
    %1197 = vmatprep.mubr.bf16.mxu0 0
    %1198 = vmatmul.mubr.bf16.gmra.mxu0 %v302
    %v1199 = vpop.f32.mrf.mxu0
    %v1200 = vadd.f32 0.0, %v1199
    %v1201 = vpop.f32.mrf.mxu0
    %v1202 = vpop.f32.mrf.mxu0
    %v1203 = vpop.f32.mrf.mxu0
    %1204 = vdwg.mxu0
    %v1205 = vmul.f32 %v1156, 0.0
    %v1206 = vadd.f32 %v1205, %v1200
    %1207 = vmatprep.subr.bf16.mxu0 0
    %1208 = vmatpush1.bf16.msra.mxu0 0
    %1209 = vmatprep.subr.bf16.mxu0 0
    %1210 = vmatpush1.bf16.msra.mxu0 0
    %1211 = vmatprep.subr.bf16.mxu0 0
    %1212 = vmatpush1.bf16.msra.mxu0 0
    %1213 = vmatprep.subr.bf16.mxu0 0
    %1214 = vmatpush1.bf16.msra.mxu0 0
    %1215 = vmatprep.subr.bf16.mxu0 0
    %1216 = vmatpush1.bf16.msra.mxu0 0
    %1217 = vmatprep.subr.bf16.mxu0 0
    %1218 = vmatpush1.bf16.msra.mxu0 0
    %1219 = vmatprep.subr.bf16.mxu0 0
    %1220 = vmatpush1.bf16.msra.mxu0 0
    %1221 = vmatprep.subr.bf16.mxu0 0
    %1222 = vmatpush1.bf16.msra.mxu0 %v1011
    %1223 = vmatprep.subr.bf16.mxu0 0
    %1224 = vmatpush2.bf16.msra.mxu0 0
    %1225 = vmatprep.subr.bf16.mxu0 0
    %1226 = vmatpush2.bf16.msra.mxu0 0
    %1227 = vmatprep.subr.bf16.mxu0 0
    %1228 = vmatpush2.bf16.msra.mxu0 0
    %1229 = vmatprep.subr.bf16.mxu0 0
    %1230 = vmatpush2.bf16.msra.mxu0 0
    %1231 = vmatprep.subr.bf16.mxu0 0
    %1232 = vmatpush2.bf16.msra.mxu0 0
    %1233 = vmatprep.subr.bf16.mxu0 0
    %1234 = vmatpush2.bf16.msra.mxu0 0
    %1235 = vmatprep.subr.bf16.mxu0 0
    %1236 = vmatpush2.bf16.msra.mxu0 0
    %1237 = vmatprep.subr.bf16.mxu0 0
    %1238 = vmatpush2.bf16.msra.mxu0 0
    %1239 = vmatprep.mubr.bf16.mxu0 0
    %1240 = vmatmul.mubr.bf16.gmra.mxu0 %v365
    %v1241 = vpop.f32.mrf.mxu0
    %v1242 = vadd.f32 0.0, %v1241
    %v1243 = vpop.f32.mrf.mxu0
    %v1244 = vpop.f32.mrf.mxu0
    %v1245 = vadd.f32 0.0, %v1244
    %v1246 = vpop.f32.mrf.mxu0
    %1247 = vdwg.mxu0
    %v1248 = vpack.c.bf16 %v1242, %v1242
    %v1249 = vpack.c.bf16 %v1245, %v1245
    %v1251 = vsel %vm148, %v1249, 0
    %1253 = vmatprep.subr.bf16.mxu0 0
    %1254 = vmatpush1.bf16.msra.mxu0 0
    %1255 = vmatprep.subr.bf16.mxu0 0
    %1256 = vmatpush1.bf16.msra.mxu0 0
    %1257 = vmatprep.subr.bf16.mxu0 0
    %1258 = vmatpush1.bf16.msra.mxu0 0
    %1259 = vmatprep.subr.bf16.mxu0 0
    %1260 = vmatpush1.bf16.msra.mxu0 0
    %1261 = vmatprep.subr.bf16.mxu0 0
    %1262 = vmatpush1.bf16.msra.mxu0 0
    %1263 = vmatprep.subr.bf16.mxu0 0
    %1264 = vmatpush1.bf16.msra.mxu0 0
    %1265 = vmatprep.subr.bf16.mxu0 0
    %1266 = vmatpush1.bf16.msra.mxu0 %v427
    %1267 = vmatprep.subr.bf16.mxu0 0
    %1268 = vmatpush1.bf16.msra.mxu0 %v426
    %1269 = vmatprep.subr.bf16.mxu0 0
    %1270 = vmatpush2.bf16.msra.mxu0 0
    %1271 = vmatprep.subr.bf16.mxu0 0
    %1272 = vmatpush2.bf16.msra.mxu0 0
    %1273 = vmatprep.subr.bf16.mxu0 0
    %1274 = vmatpush2.bf16.msra.mxu0 0
    %1275 = vmatprep.subr.bf16.mxu0 0
    %1276 = vmatpush2.bf16.msra.mxu0 0
    %1277 = vmatprep.subr.bf16.mxu0 0
    %1278 = vmatpush2.bf16.msra.mxu0 0
    %1279 = vmatprep.subr.bf16.mxu0 0
    %1280 = vmatpush2.bf16.msra.mxu0 0
    %1281 = vmatprep.subr.bf16.mxu0 0
    %1282 = vmatpush2.bf16.msra.mxu0 0
    %1283 = vmatprep.subr.bf16.mxu0 0
    %1284 = vmatpush2.bf16.msra.mxu0 0
    %1285 = vmatprep.mubr.bf16.mxu0 0
    %1286 = vmatmul.mubr.bf16.gmra.mxu0 %v1251
    %v1287 = vpop.f32.mrf.mxu0
    %v1288 = vadd.f32 0.0, %v1287
    %v1289 = vpop.f32.mrf.mxu0
    %v1290 = vpop.f32.mrf.mxu0
    %v1291 = vpop.f32.mrf.mxu0
    %1292 = vdwg.mxu0
    %v1294 = vsel %vm148, %v1248, 0
    %1296 = vmatprep.subr.bf16.mxu0 0
    %1297 = vmatpush1.bf16.msra.mxu0 0
    %1298 = vmatprep.subr.bf16.mxu0 0
    %1299 = vmatpush1.bf16.msra.mxu0 0
    %1300 = vmatprep.subr.bf16.mxu0 0
    %1301 = vmatpush1.bf16.msra.mxu0 0
    %1302 = vmatprep.subr.bf16.mxu0 0
    %1303 = vmatpush1.bf16.msra.mxu0 0
    %1304 = vmatprep.subr.bf16.mxu0 0
    %1305 = vmatpush1.bf16.msra.mxu0 0
    %1306 = vmatprep.subr.bf16.mxu0 0
    %1307 = vmatpush1.bf16.msra.mxu0 0
    %1308 = vmatprep.subr.bf16.mxu0 0
    %1309 = vmatpush1.bf16.msra.mxu0 %v482
    %1310 = vmatprep.subr.bf16.mxu0 0
    %1311 = vmatpush1.bf16.msra.mxu0 %v481
    %1312 = vmatprep.subr.bf16.mxu0 0
    %1313 = vmatpush2.bf16.msra.mxu0 0
    %1314 = vmatprep.subr.bf16.mxu0 0
    %1315 = vmatpush2.bf16.msra.mxu0 0
    %1316 = vmatprep.subr.bf16.mxu0 0
    %1317 = vmatpush2.bf16.msra.mxu0 0
    %1318 = vmatprep.subr.bf16.mxu0 0
    %1319 = vmatpush2.bf16.msra.mxu0 0
    %1320 = vmatprep.subr.bf16.mxu0 0
    %1321 = vmatpush2.bf16.msra.mxu0 0
    %1322 = vmatprep.subr.bf16.mxu0 0
    %1323 = vmatpush2.bf16.msra.mxu0 0
    %1324 = vmatprep.subr.bf16.mxu0 0
    %1325 = vmatpush2.bf16.msra.mxu0 0
    %1326 = vmatprep.subr.bf16.mxu0 0
    %1327 = vmatpush2.bf16.msra.mxu0 0
    %1328 = vmatprep.mubr.bf16.mxu0 0
    %1329 = vmatmul.mubr.bf16.gmra.mxu0 %v1294
    %v1330 = vpop.f32.mrf.mxu0
    %v1331 = vadd.f32 %v1288, %v1330
    %v1332 = vpop.f32.mrf.mxu0
    %v1333 = vpop.f32.mrf.mxu0
    %v1334 = vpop.f32.mrf.mxu0
    %1335 = vdwg.mxu0
    %v1336 = vadd.f32 %v1331, %v533
    %v1337 = vmax.f32 %v1336, 0.0
    %v1338 = vpack.c.bf16 %v1337, %v1337
    %v1340 = vsel %vm578, %v1338, 0
    %1342 = vmatprep.subr.bf16.mxu0 0
    %1343 = vmatpush1.bf16.msra.mxu0 0
    %1344 = vmatprep.subr.bf16.mxu0 0
    %1345 = vmatpush1.bf16.msra.mxu0 0
    %1346 = vmatprep.subr.bf16.mxu0 0
    %1347 = vmatpush1.bf16.msra.mxu0 0
    %1348 = vmatprep.subr.bf16.mxu0 0
    %1349 = vmatpush1.bf16.msra.mxu0 0
    %1350 = vmatprep.subr.bf16.mxu0 0
    %1351 = vmatpush1.bf16.msra.mxu0 %v573
    %1352 = vmatprep.subr.bf16.mxu0 0
    %1353 = vmatpush1.bf16.msra.mxu0 %v572
    %1354 = vmatprep.subr.bf16.mxu0 0
    %1355 = vmatpush1.bf16.msra.mxu0 %v571
    %1356 = vmatprep.subr.bf16.mxu0 0
    %1357 = vmatpush1.bf16.msra.mxu0 %v570
    %1358 = vmatprep.subr.bf16.mxu0 0
    %1359 = vmatpush2.bf16.msra.mxu0 0
    %1360 = vmatprep.subr.bf16.mxu0 0
    %1361 = vmatpush2.bf16.msra.mxu0 0
    %1362 = vmatprep.subr.bf16.mxu0 0
    %1363 = vmatpush2.bf16.msra.mxu0 0
    %1364 = vmatprep.subr.bf16.mxu0 0
    %1365 = vmatpush2.bf16.msra.mxu0 0
    %1366 = vmatprep.subr.bf16.mxu0 0
    %1367 = vmatpush2.bf16.msra.mxu0 0
    %1368 = vmatprep.subr.bf16.mxu0 0
    %1369 = vmatpush2.bf16.msra.mxu0 0
    %1370 = vmatprep.subr.bf16.mxu0 0
    %1371 = vmatpush2.bf16.msra.mxu0 0
    %1372 = vmatprep.subr.bf16.mxu0 0
    %1373 = vmatpush2.bf16.msra.mxu0 0
    %1374 = vmatprep.mubr.bf16.mxu0 0
    %1375 = vmatmul.mubr.bf16.gmra.mxu0 %v1340
    %v1376 = vpop.f32.mrf.mxu0
    %v1377 = vadd.f32 %v552, %v1376
    %v1378 = vpop.f32.mrf.mxu0
    %v1379 = vpop.f32.mrf.mxu0
    %v1380 = vpop.f32.mrf.mxu0
    %1381 = vdwg.mxu0
    %v1382 = vsel %vm623, %v1377, -1e+30
    %1383 = vmatprep.subr.bf16.mxu0 0
    %1384 = vmatpush1.bf16.msra.mxu0 0
    %1385 = vmatprep.subr.bf16.mxu0 0
    %1386 = vmatpush1.bf16.msra.mxu0 0
    %1387 = vmatprep.subr.bf16.mxu0 0
    %1388 = vmatpush1.bf16.msra.mxu0 0
    %1389 = vmatprep.subr.bf16.mxu0 0
    %1390 = vmatpush1.bf16.msra.mxu0 0
    %1391 = vmatprep.subr.bf16.mxu0 0
    %1392 = vmatpush1.bf16.msra.mxu0 %v659
    %1393 = vmatprep.subr.bf16.mxu0 0
    %1394 = vmatpush1.bf16.msra.mxu0 %v658
    %1395 = vmatprep.subr.bf16.mxu0 0
    %1396 = vmatpush1.bf16.msra.mxu0 %v657
    %1397 = vmatprep.subr.bf16.mxu0 0
    %1398 = vmatpush1.bf16.msra.mxu0 %v656
    %1399 = vmatprep.subr.bf16.mxu0 0
    %1400 = vmatpush2.bf16.msra.mxu0 0
    %1401 = vmatprep.subr.bf16.mxu0 0
    %1402 = vmatpush2.bf16.msra.mxu0 0
    %1403 = vmatprep.subr.bf16.mxu0 0
    %1404 = vmatpush2.bf16.msra.mxu0 0
    %1405 = vmatprep.subr.bf16.mxu0 0
    %1406 = vmatpush2.bf16.msra.mxu0 0
    %1407 = vmatprep.subr.bf16.mxu0 0
    %1408 = vmatpush2.bf16.msra.mxu0 0
    %1409 = vmatprep.subr.bf16.mxu0 0
    %1410 = vmatpush2.bf16.msra.mxu0 0
    %1411 = vmatprep.subr.bf16.mxu0 0
    %1412 = vmatpush2.bf16.msra.mxu0 0
    %1413 = vmatprep.subr.bf16.mxu0 0
    %1414 = vmatpush2.bf16.msra.mxu0 0
    %1415 = vmatprep.mubr.bf16.mxu0 0
    %1416 = vmatmul.mubr.bf16.gmra.mxu0 %v1340
    %v1417 = vpop.f32.mrf.mxu0
    %v1418 = vadd.f32 %v638, %v1417
    %v1419 = vpop.f32.mrf.mxu0
    %v1420 = vpop.f32.mrf.mxu0
    %v1421 = vpop.f32.mrf.mxu0
    %1422 = vdwg.mxu0
    %v1423 = vsel %vm623, %v1418, -1e+30
    %v1424 = vsel %vm148, %v1382, -inf
    %1425 = vmax.xlane.f32.xlu0 %v1424
    %v1426 = vpop.xlane.xlu0 %1425
    %v1427 = vsel %vm148, %v1423, -inf
    %1428 = vmax.xlane.f32.xlu0 %v1427
    %v1429 = vpop.xlane.xlu0 %1428
    %v1430 = vmax.f32 %v1426, %v1429
    %v1431 = vrot.slane %v1430, 4
    %v1432 = vmax.f32 %v1430, %v1431
    %v1433 = vrot.slane %v1432, 2
    %v1434 = vmax.f32 %v1432, %v1433
    %v1435 = vrot.slane %v1434, 1
    %v1436 = vmax.f32 %v1434, %v1435
    %v1437 = vmax.f32 %v1152, %v1436
    %v1438 = vsub.f32 %v1152, %v1437
    %v1439 = vmul.f32 %v1438, 8.0
    %v1440 = vmul.f32 %v1439, 1.442695
    %v1441 = vpow.pop %v1440
    %v1442 = vsub.f32 %v1382, %v1437
    %v1443 = vsub.f32 %v1423, %v1437
    %v1444 = vmul.f32 %v1442, 8.0
    %v1445 = vmul.f32 %v1443, 8.0
    %v1446 = vmul.f32 %v1444, 1.442695
    %v1447 = vpow.pop %v1446
    %v1448 = vmul.f32 %v1445, 1.442695
    %v1449 = vpow.pop %v1448
    %v1450 = vpack.c.bf16 %v1449, %v1447
    %1451 = vmatprep.subr.bf16.mxu0 0
    %1452 = vmatpush1.bf16.msra.mxu0 0
    %1453 = vmatprep.subr.bf16.mxu0 0
    %1454 = vmatpush1.bf16.msra.mxu0 0
    %1455 = vmatprep.subr.bf16.mxu0 0
    %1456 = vmatpush1.bf16.msra.mxu0 0
    %1457 = vmatprep.subr.bf16.mxu0 0
    %1458 = vmatpush1.bf16.msra.mxu0 0
    %1459 = vmatprep.subr.bf16.mxu0 0
    %1460 = vmatpush1.bf16.msra.mxu0 0
    %1461 = vmatprep.subr.bf16.mxu0 0
    %1462 = vmatpush1.bf16.msra.mxu0 0
    %1463 = vmatprep.subr.bf16.mxu0 0
    %1464 = vmatpush1.bf16.msra.mxu0 0
    %1465 = vmatprep.subr.bf16.mxu0 0
    %1466 = vmatpush1.bf16.msra.mxu0 %v1450
    %1467 = vmatprep.subr.bf16.mxu0 0
    %1468 = vmatpush2.bf16.msra.mxu0 0
    %1469 = vmatprep.subr.bf16.mxu0 0
    %1470 = vmatpush2.bf16.msra.mxu0 0
    %1471 = vmatprep.subr.bf16.mxu0 0
    %1472 = vmatpush2.bf16.msra.mxu0 0
    %1473 = vmatprep.subr.bf16.mxu0 0
    %1474 = vmatpush2.bf16.msra.mxu0 0
    %1475 = vmatprep.subr.bf16.mxu0 0
    %1476 = vmatpush2.bf16.msra.mxu0 0
    %1477 = vmatprep.subr.bf16.mxu0 0
    %1478 = vmatpush2.bf16.msra.mxu0 0
    %1479 = vmatprep.subr.bf16.mxu0 0
    %1480 = vmatpush2.bf16.msra.mxu0 0
    %1481 = vmatprep.subr.bf16.mxu0 0
    %1482 = vmatpush2.bf16.msra.mxu0 0
    %1483 = vmatprep.mubr.bf16.mxu0 0
    %1484 = vmatmul.mubr.bf16.gmra.mxu0 %v750
    %v1485 = vpop.f32.mrf.mxu0
    %v1486 = vadd.f32 0.0, %v1485
    %v1487 = vpop.f32.mrf.mxu0
    %v1488 = vpop.f32.mrf.mxu0
    %v1489 = vpop.f32.mrf.mxu0
    %1490 = vdwg.mxu0
    %v1491 = vmul.f32 %v1206, %v1441
    %v1492 = vadd.f32 %v1491, %v1486
    %v1493 = vadd.f32 %v1492, 1e-16
    %v1494 = vlog2.pop %v1493
    %v1495 = vmul.f32 %v1494, 0.6931472
    %v1496 = vmul.f32 %v1495, 0.125
    %v1497 = vadd.f32 %v1496, %v1437
    %v1498 = vpack.c.bf16 %v1497, %v1497
    %v1499 = vsel %vm148, %v1009, 0
    %1501 = vmatprep.subr.bf16.mxu0 0
    %1502 = vmatpush1.bf16.msra.mxu0 0
    %1503 = vmatprep.subr.bf16.mxu0 0
    %1504 = vmatpush1.bf16.msra.mxu0 0
    %1505 = vmatprep.subr.bf16.mxu0 0
    %1506 = vmatpush1.bf16.msra.mxu0 0
    %1507 = vmatprep.subr.bf16.mxu0 0
    %1508 = vmatpush1.bf16.msra.mxu0 0
    %1509 = vmatprep.subr.bf16.mxu0 0
    %1510 = vmatpush1.bf16.msra.mxu0 0
    %1511 = vmatprep.subr.bf16.mxu0 0
    %1512 = vmatpush1.bf16.msra.mxu0 0
    %1513 = vmatprep.subr.bf16.mxu0 0
    %1514 = vmatpush1.bf16.msra.mxu0 %v817
    %1515 = vmatprep.subr.bf16.mxu0 0
    %1516 = vmatpush1.bf16.msra.mxu0 %v816
    %1517 = vmatprep.subr.bf16.mxu0 0
    %1518 = vmatpush2.bf16.msra.mxu0 0
    %1519 = vmatprep.subr.bf16.mxu0 0
    %1520 = vmatpush2.bf16.msra.mxu0 0
    %1521 = vmatprep.subr.bf16.mxu0 0
    %1522 = vmatpush2.bf16.msra.mxu0 0
    %1523 = vmatprep.subr.bf16.mxu0 0
    %1524 = vmatpush2.bf16.msra.mxu0 0
    %1525 = vmatprep.subr.bf16.mxu0 0
    %1526 = vmatpush2.bf16.msra.mxu0 0
    %1527 = vmatprep.subr.bf16.mxu0 0
    %1528 = vmatpush2.bf16.msra.mxu0 0
    %1529 = vmatprep.subr.bf16.mxu0 0
    %1530 = vmatpush2.bf16.msra.mxu0 0
    %1531 = vmatprep.subr.bf16.mxu0 0
    %1532 = vmatpush2.bf16.msra.mxu0 0
    %1533 = vmatprep.mubr.bf16.mxu0 0
    %1534 = vmatmul.mubr.bf16.gmra.mxu0 %v1499
    %v1535 = vpop.f32.mrf.mxu0
    %v1536 = vadd.f32 0.0, %v1535
    %v1537 = vpop.f32.mrf.mxu0
    %v1538 = vpop.f32.mrf.mxu0
    %v1539 = vpop.f32.mrf.mxu0
    %1540 = vdwg.mxu0
    %v1542 = vsel %vm148, %v1498, 0
    %1544 = vmatprep.subr.bf16.mxu0 0
    %1545 = vmatpush1.bf16.msra.mxu0 0
    %1546 = vmatprep.subr.bf16.mxu0 0
    %1547 = vmatpush1.bf16.msra.mxu0 0
    %1548 = vmatprep.subr.bf16.mxu0 0
    %1549 = vmatpush1.bf16.msra.mxu0 0
    %1550 = vmatprep.subr.bf16.mxu0 0
    %1551 = vmatpush1.bf16.msra.mxu0 0
    %1552 = vmatprep.subr.bf16.mxu0 0
    %1553 = vmatpush1.bf16.msra.mxu0 0
    %1554 = vmatprep.subr.bf16.mxu0 0
    %1555 = vmatpush1.bf16.msra.mxu0 0
    %1556 = vmatprep.subr.bf16.mxu0 0
    %1557 = vmatpush1.bf16.msra.mxu0 %v871
    %1558 = vmatprep.subr.bf16.mxu0 0
    %1559 = vmatpush1.bf16.msra.mxu0 %v870
    %1560 = vmatprep.subr.bf16.mxu0 0
    %1561 = vmatpush2.bf16.msra.mxu0 0
    %1562 = vmatprep.subr.bf16.mxu0 0
    %1563 = vmatpush2.bf16.msra.mxu0 0
    %1564 = vmatprep.subr.bf16.mxu0 0
    %1565 = vmatpush2.bf16.msra.mxu0 0
    %1566 = vmatprep.subr.bf16.mxu0 0
    %1567 = vmatpush2.bf16.msra.mxu0 0
    %1568 = vmatprep.subr.bf16.mxu0 0
    %1569 = vmatpush2.bf16.msra.mxu0 0
    %1570 = vmatprep.subr.bf16.mxu0 0
    %1571 = vmatpush2.bf16.msra.mxu0 0
    %1572 = vmatprep.subr.bf16.mxu0 0
    %1573 = vmatpush2.bf16.msra.mxu0 0
    %1574 = vmatprep.subr.bf16.mxu0 0
    %1575 = vmatpush2.bf16.msra.mxu0 0
    %1576 = vmatprep.mubr.bf16.mxu0 0
    %1577 = vmatmul.mubr.bf16.gmra.mxu0 %v1542
    %v1578 = vpop.f32.mrf.mxu0
    %v1579 = vadd.f32 %v1536, %v1578
    %v1580 = vpop.f32.mrf.mxu0
    %v1581 = vpop.f32.mrf.mxu0
    %v1582 = vpop.f32.mrf.mxu0
    %1583 = vdwg.mxu0
    %v1584 = vadd.f32 %v1579, %v922
    %v1585 = vmax.f32 %v1584, 0.0
    %v1586 = vpack.c.bf16 %v1585, %v1585
    %v1588 = vsel %vm578, %v1586, 0
    %1590 = vmatprep.subr.bf16.mxu0 0
    %1591 = vmatpush1.bf16.msra.mxu0 0
    %1592 = vmatprep.subr.bf16.mxu0 0
    %1593 = vmatpush1.bf16.msra.mxu0 0
    %1594 = vmatprep.subr.bf16.mxu0 0
    %1595 = vmatpush1.bf16.msra.mxu0 0
    %1596 = vmatprep.subr.bf16.mxu0 0
    %1597 = vmatpush1.bf16.msra.mxu0 0
    %1598 = vmatprep.subr.bf16.mxu0 0
    %1599 = vmatpush1.bf16.msra.mxu0 %v961
    %1600 = vmatprep.subr.bf16.mxu0 0
    %1601 = vmatpush1.bf16.msra.mxu0 %v960
    %1602 = vmatprep.subr.bf16.mxu0 0
    %1603 = vmatpush1.bf16.msra.mxu0 %v959
    %1604 = vmatprep.subr.bf16.mxu0 0
    %1605 = vmatpush1.bf16.msra.mxu0 %v958
    %1606 = vmatprep.subr.bf16.mxu0 0
    %1607 = vmatpush2.bf16.msra.mxu0 0
    %1608 = vmatprep.subr.bf16.mxu0 0
    %1609 = vmatpush2.bf16.msra.mxu0 0
    %1610 = vmatprep.subr.bf16.mxu0 0
    %1611 = vmatpush2.bf16.msra.mxu0 0
    %1612 = vmatprep.subr.bf16.mxu0 0
    %1613 = vmatpush2.bf16.msra.mxu0 0
    %1614 = vmatprep.subr.bf16.mxu0 0
    %1615 = vmatpush2.bf16.msra.mxu0 0
    %1616 = vmatprep.subr.bf16.mxu0 0
    %1617 = vmatpush2.bf16.msra.mxu0 0
    %1618 = vmatprep.subr.bf16.mxu0 0
    %1619 = vmatpush2.bf16.msra.mxu0 0
    %1620 = vmatprep.subr.bf16.mxu0 0
    %1621 = vmatpush2.bf16.msra.mxu0 0
    %1622 = vmatprep.mubr.bf16.mxu0 0
    %1623 = vmatmul.mubr.bf16.gmra.mxu0 %v1588
    %v1624 = vpop.f32.mrf.mxu0
    %v1625 = vadd.f32 %v940, %v1624
    %v1626 = vpop.f32.mrf.mxu0
    %v1627 = vpop.f32.mrf.mxu0
    %v1628 = vpop.f32.mrf.mxu0
    %1629 = vdwg.mxu0
    %1630 = vst.msk [vmem:[#allocation2] sm:$0xff] %vm148, %v1625
    // Predicated region
    $region78: #{tpu_custom_call.1} parent=1 // pred_check
      _
    $region79: #{tpu_custom_call.1} parent=1 // pred_check_branch
      %1632 = sbr.rel (0) target = $region81
    $region80: #{tpu_custom_call.1} parent=1 // pred_region
      %s1634 = ssub.s32 128, 128
      %1635 = vsyncadd [#allocation3], %s1634
      %s1637 = sshll.u32 [#allocation2], 4
      %s1638 = int_to_ptr.vmem [resolvable:$true] %s1637
      %1640 = dma.vmem_to_hbm [thread:$0]  %s1638, 128, %s19, [#allocation3]
    $region81: #{tpu_custom_call.1} parent=1 // pred_fallthru
      _
    // Predicated region
    $region82: #{tpu_custom_call.1} parent=1 // pred_check
      _
    $region83: #{tpu_custom_call.1} parent=1 // pred_check_branch
      %1642 = sbr.rel (0) target = $region85
    $region84: #{tpu_custom_call.1} parent=1 // pred_region
      %1643 = dma.done [#allocation3], 128
    $region85: #{tpu_custom_call.1} parent=1 // pred_fallthru
      _
    %1644 = vsyncpa [#allocation3], 1

</llo_original>
